<compile_context>
chip_gen: v6e
topology: v6e:2x2x1
jax: 0.10.0
libtpu: 0.0.40
codegen_flags: <defaults>
</compile_context>

<pallas_src>
import jax
import jax.numpy as jnp
from jax.experimental import pallas as pl
from jax.experimental.pallas import tpu as pltpu


def mlp5_kernel(x_ref,
                w1_ref, w2_ref, w3_ref, w4_ref, w5_ref,
                b_all_ref,
                o_ref):
    """One batch tile through all 5 layers. Weights stay resident in VMEM."""
    h = x_ref[...]                                  # (TB, in_dim) bf16
    b_all = b_all_ref[...]                          # (5, max_out) f32, one load
    acc = None
    for i, w_ref in enumerate((w1_ref, w2_ref, w3_ref, w4_ref, w5_ref)):
        out_dim = w_ref.shape[1]
        # bf16 x bf16 -> f32 accumulate on the MXU.
        acc = jnp.dot(h, w_ref[...], preferred_element_type=jnp.float32)
        # bias add + nl (ReLU) in f32 (no bf16 VPU on v5e).
        acc = jnp.maximum(acc + b_all[i:i + 1, :out_dim], 0.0)
        # Feed the next matmul in bf16 (dead after the last layer; DCE'd).
        h = acc.astype(jnp.bfloat16)
    # last = Identity
    o_ref[...] = acc.astype(o_ref.dtype)


def _round_up(n, m):
    return ((n + m - 1) // m) * m


def model5l_forward(x, params, *, batch_tile=128):
    """x: (B, C, H, W) float32.  params: 5 (W, b) pairs, W:(in,out), b:(1,out)."""
    B = x.shape[0]
    x2 = x.reshape(B, -1)                                   # flatten(1, -1)
    in_dim = x2.shape[1]
    out_dim = params[-1][0].shape[1]

    # bf16 operands for the MXU; accumulation is f32 inside the kernel.
    x2 = x2.astype(jnp.bfloat16)
    ws = [w.astype(jnp.bfloat16) for (w, _) in params]

    # Pack the five (1, out_i) biases into a single (5, max_out) f32 array.
    max_out = max(w.shape[1] for (w, _) in params)
    b_rows = [jnp.pad(b, ((0, 0), (0, max_out - b.shape[1]))) for (_, b) in params]
    b_all = jnp.concatenate(b_rows, axis=0).astype(jnp.float32)

    # Batch tiling: at least a 16-row sublane tile (bf16), 128 rows when available.
    TB = batch_tile if B >= batch_tile else _round_up(max(B, 1), 16)
    B_pad = _round_up(B, TB)
    if B_pad != B:
        x2 = jnp.pad(x2, ((0, B_pad - B), (0, 0)))
    grid = (B_pad // TB,)

    # Advisory cost estimate (helps XLA schedule the custom call).
    flops = 2 * B_pad * sum(w.shape[0] * w.shape[1] for (w, _) in params)
    bytes_accessed = (x2.size * 2                       # bf16 input
                      + sum(w.size * 2 for w in ws)     # bf16 weights
                      + b_all.size * 4                  # f32 biases
                      + B_pad * out_dim * 4)            # f32 output
    cost = pl.CostEstimate(flops=int(flops), transcendentals=0,
                           bytes_accessed=int(bytes_accessed))

    # x / out tiled over the batch grid; weights + biases VMEM-resident
    # (constant index_map -> fetched once, reused every grid step).
    x_spec = pl.BlockSpec((TB, in_dim), lambda i: (i, 0))
    w_specs = [pl.BlockSpec(w.shape, lambda i: (0, 0)) for w in ws]
    b_spec = pl.BlockSpec(b_all.shape, lambda i: (0, 0))
    o_spec = pl.BlockSpec((TB, out_dim), lambda i: (i, 0))

    out_padded = pl.pallas_call(
        mlp5_kernel,
        out_shape=jax.ShapeDtypeStruct((B_pad, out_dim), jnp.float32),
        grid_spec=pltpu.PrefetchScalarGridSpec(
            num_scalar_prefetch=0,
            grid=grid,
            in_specs=[x_spec] + w_specs + [b_spec],
            out_specs=o_spec,
        ),
        compiler_params=pltpu.CompilerParams(
            dimension_semantics=("parallel",),          # shard over v7x's 2 TCs
            vmem_limit_bytes=64 * 1024 * 1024,          # headroom; fits all chips
        ),
        cost_estimate=cost,
    )(x2, *ws, b_all)

    return out_padded[:B]


def init_params(key, dims):
    """Deterministic nn.Linear-style init. dims = [in, h1, h2, h3, h4, h5]."""
    params = []
    for i in range(5):
        fan_in, fan_out = dims[i], dims[i + 1]
        key, kw, kb = jax.random.split(key, 3)
        bound = 1.0 / jnp.sqrt(jnp.float32(fan_in))
        # Stored as (in, out) == transpose of torch's (out, in) weight.
        w = jax.random.uniform(kw, (fan_in, fan_out), jnp.float32, -bound, bound)
        b = jax.random.uniform(kb, (1, fan_out), jnp.float32, -bound, bound)
        params.append((w, b))
    return params


def reference_forward(x, params):
    """Pure-JAX reference with identical mixed precision (bf16 matmul, f32 acc)."""
    h = x.reshape(x.shape[0], -1).astype(jnp.bfloat16)
    acc = None
    for w, b in params:
        acc = jnp.dot(h, w.astype(jnp.bfloat16),
                      preferred_element_type=jnp.float32)
        acc = jnp.maximum(acc + b, 0.0)     # nl = ReLU after every linear
        h = acc.astype(jnp.bfloat16)
    return acc                              # last = Identity


if __name__ == "__main__":
    key = jax.random.PRNGKey(0)
    kx, kp = jax.random.split(key)

    # Small input consistent with the module: flattened by forward().
    B, C, H, W = 2, 4, 16, 16
    x = jax.random.normal(kx, (B, C, H, W), jnp.float32)

    in_dim = C * H * W                      # 1024
    dims = [in_dim, 256, 256, 256, 256, 256]
    params = init_params(kp, dims)

    out = model5l_forward(x, params)
    out = jax.block_until_ready(out)

    ref = reference_forward(x, params)
    assert out.shape == (B, dims[-1]), out.shape
    assert jnp.allclose(out, ref, atol=1e-2, rtol=1e-2), "mismatch vs reference"

    print("KERNEL_OK")
</pallas_src>

<mosaic_0001>
module attributes {stable_mosaic.version = 11 : i64} {
  func.func @mlp5_kernel(%arg0: i32, %arg1: memref<16x1024xbf16, #tpu.memory_space<vmem>>, %arg2: memref<1024x256xbf16, #tpu.memory_space<vmem>>, %arg3: memref<256x256xbf16, #tpu.memory_space<vmem>>, %arg4: memref<256x256xbf16, #tpu.memory_space<vmem>>, %arg5: memref<256x256xbf16, #tpu.memory_space<vmem>>, %arg6: memref<256x256xbf16, #tpu.memory_space<vmem>>, %arg7: memref<5x256xf32, #tpu.memory_space<vmem>>, %arg8: memref<16x256xf32, #tpu.memory_space<vmem>>) attributes {dimension_semantics = [#tpu.dimension_semantics<parallel>], iteration_bounds = array<i64: 1>, scalar_prefetch = 0 : i64, scratch_operands = 0 : i64, tpu.core_type = #tpu.core_type<tc>, window_params = [{transform_indices = @transform_0, window_bounds = array<i64: 16, 1024>}, {pipeline_mode = #tpu.pipeline_mode<synchronous>, transform_indices = @transform_1, window_bounds = array<i64: 1024, 256>}, {pipeline_mode = #tpu.pipeline_mode<synchronous>, transform_indices = @transform_2, window_bounds = array<i64: 256, 256>}, {pipeline_mode = #tpu.pipeline_mode<synchronous>, transform_indices = @transform_3, window_bounds = array<i64: 256, 256>}, {pipeline_mode = #tpu.pipeline_mode<synchronous>, transform_indices = @transform_4, window_bounds = array<i64: 256, 256>}, {pipeline_mode = #tpu.pipeline_mode<synchronous>, transform_indices = @transform_5, window_bounds = array<i64: 256, 256>}, {pipeline_mode = #tpu.pipeline_mode<synchronous>, transform_indices = @transform_6, window_bounds = array<i64: 5, 256>}, {transform_indices = @transform_7, window_bounds = array<i64: 16, 256>}]} {
    %c0 = arith.constant 0 : index
    %c0_0 = arith.constant 0 : index
    %0 = vector.load %arg1[%c0, %c0_0] : memref<16x1024xbf16, #tpu.memory_space<vmem>>, vector<16x1024xbf16>
    %c0_1 = arith.constant 0 : index
    %c0_2 = arith.constant 0 : index
    %1 = vector.load %arg7[%c0_1, %c0_2] : memref<5x256xf32, #tpu.memory_space<vmem>>, vector<5x256xf32>
    %c0_3 = arith.constant 0 : index
    %c0_4 = arith.constant 0 : index
    %2 = vector.load %arg2[%c0_3, %c0_4] : memref<1024x256xbf16, #tpu.memory_space<vmem>>, vector<1024x256xbf16>
    %cst = arith.constant dense<0.000000e+00> : vector<16x256xf32>
    %3 = tpu.matmul %0, %2, %cst {dimension_numbers = #tpu.dot_dimension_numbers<[1], [0], [0], [1], [0, 0, 1, 1], [], []>} : vector<16x1024xbf16>, vector<1024x256xbf16>, vector<16x256xf32> -> vector<16x256xf32>
    %4 = vector.extract_strided_slice %1 {offsets = [0, 0], sizes = [1, 256], strides = [1, 1]} : vector<5x256xf32> to vector<1x256xf32>
    %5 = vector.broadcast %4 : vector<1x256xf32> to vector<16x256xf32>
    %6 = arith.addf %3, %5 : vector<16x256xf32>
    %cst_5 = arith.constant 0.000000e+00 : f32
    %7 = vector.broadcast %cst_5 : f32 to vector<16x256xf32>
    %8 = arith.maximumf %6, %7 : vector<16x256xf32>
    %9 = arith.truncf %8 : vector<16x256xf32> to vector<16x256xbf16>
    %c0_6 = arith.constant 0 : index
    %c0_7 = arith.constant 0 : index
    %10 = vector.load %arg3[%c0_6, %c0_7] : memref<256x256xbf16, #tpu.memory_space<vmem>>, vector<256x256xbf16>
    %cst_8 = arith.constant dense<0.000000e+00> : vector<16x256xf32>
    %11 = tpu.matmul %9, %10, %cst_8 {dimension_numbers = #tpu.dot_dimension_numbers<[1], [0], [0], [1], [0, 0, 1, 1], [], []>} : vector<16x256xbf16>, vector<256x256xbf16>, vector<16x256xf32> -> vector<16x256xf32>
    %12 = vector.extract_strided_slice %1 {offsets = [1, 0], sizes = [1, 256], strides = [1, 1]} : vector<5x256xf32> to vector<1x256xf32>
    %13 = vector.broadcast %12 : vector<1x256xf32> to vector<16x256xf32>
    %14 = arith.addf %11, %13 : vector<16x256xf32>
    %cst_9 = arith.constant 0.000000e+00 : f32
    %15 = vector.broadcast %cst_9 : f32 to vector<16x256xf32>
    %16 = arith.maximumf %14, %15 : vector<16x256xf32>
    %17 = arith.truncf %16 : vector<16x256xf32> to vector<16x256xbf16>
    %c0_10 = arith.constant 0 : index
    %c0_11 = arith.constant 0 : index
    %18 = vector.load %arg4[%c0_10, %c0_11] : memref<256x256xbf16, #tpu.memory_space<vmem>>, vector<256x256xbf16>
    %cst_12 = arith.constant dense<0.000000e+00> : vector<16x256xf32>
    %19 = tpu.matmul %17, %18, %cst_12 {dimension_numbers = #tpu.dot_dimension_numbers<[1], [0], [0], [1], [0, 0, 1, 1], [], []>} : vector<16x256xbf16>, vector<256x256xbf16>, vector<16x256xf32> -> vector<16x256xf32>
    %20 = vector.extract_strided_slice %1 {offsets = [2, 0], sizes = [1, 256], strides = [1, 1]} : vector<5x256xf32> to vector<1x256xf32>
    %21 = vector.broadcast %20 : vector<1x256xf32> to vector<16x256xf32>
    %22 = arith.addf %19, %21 : vector<16x256xf32>
    %cst_13 = arith.constant 0.000000e+00 : f32
    %23 = vector.broadcast %cst_13 : f32 to vector<16x256xf32>
    %24 = arith.maximumf %22, %23 : vector<16x256xf32>
    %25 = arith.truncf %24 : vector<16x256xf32> to vector<16x256xbf16>
    %c0_14 = arith.constant 0 : index
    %c0_15 = arith.constant 0 : index
    %26 = vector.load %arg5[%c0_14, %c0_15] : memref<256x256xbf16, #tpu.memory_space<vmem>>, vector<256x256xbf16>
    %cst_16 = arith.constant dense<0.000000e+00> : vector<16x256xf32>
    %27 = tpu.matmul %25, %26, %cst_16 {dimension_numbers = #tpu.dot_dimension_numbers<[1], [0], [0], [1], [0, 0, 1, 1], [], []>} : vector<16x256xbf16>, vector<256x256xbf16>, vector<16x256xf32> -> vector<16x256xf32>
    %28 = vector.extract_strided_slice %1 {offsets = [3, 0], sizes = [1, 256], strides = [1, 1]} : vector<5x256xf32> to vector<1x256xf32>
    %29 = vector.broadcast %28 : vector<1x256xf32> to vector<16x256xf32>
    %30 = arith.addf %27, %29 : vector<16x256xf32>
    %cst_17 = arith.constant 0.000000e+00 : f32
    %31 = vector.broadcast %cst_17 : f32 to vector<16x256xf32>
    %32 = arith.maximumf %30, %31 : vector<16x256xf32>
    %33 = arith.truncf %32 : vector<16x256xf32> to vector<16x256xbf16>
    %c0_18 = arith.constant 0 : index
    %c0_19 = arith.constant 0 : index
    %34 = vector.load %arg6[%c0_18, %c0_19] : memref<256x256xbf16, #tpu.memory_space<vmem>>, vector<256x256xbf16>
    %cst_20 = arith.constant dense<0.000000e+00> : vector<16x256xf32>
    %35 = tpu.matmul %33, %34, %cst_20 {dimension_numbers = #tpu.dot_dimension_numbers<[1], [0], [0], [1], [0, 0, 1, 1], [], []>} : vector<16x256xbf16>, vector<256x256xbf16>, vector<16x256xf32> -> vector<16x256xf32>
    %36 = vector.extract_strided_slice %1 {offsets = [4, 0], sizes = [1, 256], strides = [1, 1]} : vector<5x256xf32> to vector<1x256xf32>
    %37 = vector.broadcast %36 : vector<1x256xf32> to vector<16x256xf32>
    %38 = arith.addf %35, %37 : vector<16x256xf32>
    %cst_21 = arith.constant 0.000000e+00 : f32
    %39 = vector.broadcast %cst_21 : f32 to vector<16x256xf32>
    %40 = arith.maximumf %38, %39 : vector<16x256xf32>
    %c0_22 = arith.constant 0 : index
    %c0_23 = arith.constant 0 : index
    %41 = vector.load %arg8[%c0_22, %c0_23] : memref<16x256xf32, #tpu.memory_space<vmem>>, vector<16x256xf32>
    tpu.vector_store %arg8[%c0_22, %c0_23], %40 {strides = array<i32>} : memref<16x256xf32, #tpu.memory_space<vmem>>, vector<16x256xf32>,
    return
  }
  func.func @transform_0(%arg0: i32) -> (i32, i32) {
    %c0_i32 = arith.constant 0 : i32
    %c0_i32_0 = arith.constant 0 : i32
    return %arg0, %c0_i32 : i32, i32
  }
  func.func @transform_1(%arg0: i32) -> (i32, i32) {
    %c0_i32 = arith.constant 0 : i32
    %c0_i32_0 = arith.constant 0 : i32
    %c0_i32_1 = arith.constant 0 : i32
    return %c0_i32, %c0_i32_0 : i32, i32
  }
  func.func @transform_2(%arg0: i32) -> (i32, i32) {
    %c0_i32 = arith.constant 0 : i32
    %c0_i32_0 = arith.constant 0 : i32
    %c0_i32_1 = arith.constant 0 : i32
    return %c0_i32, %c0_i32_0 : i32, i32
  }
  func.func @transform_3(%arg0: i32) -> (i32, i32) {
    %c0_i32 = arith.constant 0 : i32
    %c0_i32_0 = arith.constant 0 : i32
    %c0_i32_1 = arith.constant 0 : i32
    return %c0_i32, %c0_i32_0 : i32, i32
  }
  func.func @transform_4(%arg0: i32) -> (i32, i32) {
    %c0_i32 = arith.constant 0 : i32
    %c0_i32_0 = arith.constant 0 : i32
    %c0_i32_1 = arith.constant 0 : i32
    return %c0_i32, %c0_i32_0 : i32, i32
  }
  func.func @transform_5(%arg0: i32) -> (i32, i32) {
    %c0_i32 = arith.constant 0 : i32
    %c0_i32_0 = arith.constant 0 : i32
    %c0_i32_1 = arith.constant 0 : i32
    return %c0_i32, %c0_i32_0 : i32, i32
  }
  func.func @transform_6(%arg0: i32) -> (i32, i32) {
    %c0_i32 = arith.constant 0 : i32
    %c0_i32_0 = arith.constant 0 : i32
    %c0_i32_1 = arith.constant 0 : i32
    return %c0_i32, %c0_i32_0 : i32, i32
  }
  func.func @transform_7(%arg0: i32) -> (i32, i32) {
    %c0_i32 = arith.constant 0 : i32
    %c0_i32_0 = arith.constant 0 : i32
    return %arg0, %c0_i32 : i32, i32
  }
}

</mosaic_0001>

<llo_original>
// kernel: tpu_custom_call.1
$region0: #{tpu_custom_call.1}
  #allocation0 [shape = 'u32[]', space=smem, size = 0x4, offset = 0x4, fixed_abs, tag = 'smem constant byte address 0x4 - core index']
  #allocation1 [shape = 'u32[144,128]{1,0:T(1,128)}', space=vmem, size = 0x12000, scoped, tag = 'internal scratch']
  %s0 = inlined_call_operand.hbm [shape: bf16[16,1024], index: 0, kind: input, shape index: {}]
  %s1 = inlined_call_operand.hbm [shape: bf16[1024,256], index: 1, kind: input, shape index: {}]
  %s2 = inlined_call_operand.hbm [shape: bf16[256,256], index: 2, kind: input, shape index: {}]
  %s3 = inlined_call_operand.hbm [shape: bf16[256,256], index: 3, kind: input, shape index: {}]
  %s4 = inlined_call_operand.hbm [shape: bf16[256,256], index: 4, kind: input, shape index: {}]
  %s5 = inlined_call_operand.hbm [shape: bf16[256,256], index: 5, kind: input, shape index: {}]
  %s6 = inlined_call_operand.hbm [shape: f32[5,256], index: 6, kind: input, shape index: {}]
  %s7 = inlined_call_operand.hbm [shape: f32[16,256], index: 7, kind: output, shape index: {}]
  %s8 = sld [smem:[#allocation0]]
  $region66: #{tpu_custom_call.1} parent=0
    _
  %s10 = ssub.s32 1, %s8
  %s11 = scalar_select 0, %s10, %s8
  $region1: #{tpu_custom_call.1} parent=0
    #allocation2 [shape = 'u8[32768]{0}', space=vmem, size = 0x8000, scoped, tag = 'input window, operand 0, single buffered']
    #allocation3 [shape = 's32[1]{0}', space=sflag, size = 0x4, scoped, tag = 'scoped memory for tpu_custom_call.1']
    #allocation4 [shape = 's32[1]{0}', space=sflag, size = 0x4, scoped, tag = 'scoped memory for tpu_custom_call.1']
    #allocation5 [shape = 'u8[524288]{0}', space=vmem, size = 0x80000, scoped, tag = 'input window, operand 1, single buffered']
    #allocation6 [shape = 's32[1]{0}', space=sflag, size = 0x4, scoped, tag = 'scoped memory for tpu_custom_call.1']
    #allocation7 [shape = 'u8[131072]{0}', space=vmem, size = 0x20000, scoped, tag = 'input window, operand 2, single buffered']
    #allocation8 [shape = 'u8[131072]{0}', space=vmem, size = 0x20000, scoped, tag = 'input window, operand 3, single buffered']
    #allocation9 [shape = 's32[1]{0}', space=sflag, size = 0x4, scoped, tag = 'scoped memory for tpu_custom_call.1']
    #allocation10 [shape = 'u8[131072]{0}', space=vmem, size = 0x20000, scoped, tag = 'input window, operand 4, single buffered']
    #allocation11 [shape = 'u8[131072]{0}', space=vmem, size = 0x20000, scoped, tag = 'input window, operand 5, single buffered']
    #allocation12 [shape = 's32[1]{0}', space=sflag, size = 0x4, scoped, tag = 'scoped memory for tpu_custom_call.1']
    #allocation13 [shape = 'u8[8192]{0}', space=vmem, size = 0x2000, scoped, tag = 'input window, operand 6, single buffered']
    #allocation14 [shape = 'u8[16384]{0}', space=vmem, size = 0x4000, scoped, tag = 'output window, operand 0, single buffered']
    %12 = vsyncpa [#allocation3], 0
    %13 = vsyncpa [#allocation6], 0
    %14 = vsyncpa [#allocation9], 0
    %15 = vsyncpa [#allocation12], 0
    %16 = vsyncpa [#allocation4], 0
    // Predicated region
    $region2: #{tpu_custom_call.1} parent=1 // pred_check
      _
    $region3: #{tpu_custom_call.1} parent=1 // pred_check_branch
      %18 = sbr.rel (0) target = $region5
    $region4: #{tpu_custom_call.1} parent=1 // pred_region
      %s20 = ssub.s32 1024, 1024
      %21 = vsyncadd [#allocation3], %s20
      %s22 = sshll.u32 [#allocation2], 4
      %s23 = int_to_ptr.vmem [resolvable:$true] %s22
      %28 = dma.hbm_to_vmem [thread:$0]  %s0, 1024, %s23, [#allocation3], 512, 512, 32
    $region5: #{tpu_custom_call.1} parent=1 // pred_fallthru
      _
    // Predicated region
    $region6: #{tpu_custom_call.1} parent=1 // pred_check
      _
    $region7: #{tpu_custom_call.1} parent=1 // pred_check_branch
      %30 = sbr.rel (0) target = $region9
    $region8: #{tpu_custom_call.1} parent=1 // pred_region
      %s32 = ssub.s32 16384, 16384
      %33 = vsyncadd [#allocation6], %s32
      %s34 = sshll.u32 [#allocation5], 4
      %s35 = int_to_ptr.vmem [resolvable:$true] %s34
      %40 = dma.hbm_to_vmem [thread:$0]  %s1, 16384, %s35, [#allocation6], 128, 128, 8
    $region9: #{tpu_custom_call.1} parent=1 // pred_fallthru
      _
    // Predicated region
    $region10: #{tpu_custom_call.1} parent=1 // pred_check
      _
    $region11: #{tpu_custom_call.1} parent=1 // pred_check_branch
      %42 = sbr.rel (0) target = $region13
    $region12: #{tpu_custom_call.1} parent=1 // pred_region
      %s44 = ssub.s32 4096, 4096
      %45 = vsyncadd [#allocation6], %s44
      %s46 = sshll.u32 [#allocation7], 4
      %s47 = int_to_ptr.vmem [resolvable:$true] %s46
      %52 = dma.hbm_to_vmem [thread:$0]  %s2, 4096, %s47, [#allocation6], 128, 128, 8
    $region13: #{tpu_custom_call.1} parent=1 // pred_fallthru
      _
    // Predicated region
    $region14: #{tpu_custom_call.1} parent=1 // pred_check
      _
    $region15: #{tpu_custom_call.1} parent=1 // pred_check_branch
      %54 = sbr.rel (0) target = $region17
    $region16: #{tpu_custom_call.1} parent=1 // pred_region
      %s56 = ssub.s32 4096, 4096
      %57 = vsyncadd [#allocation9], %s56
      %s58 = sshll.u32 [#allocation8], 4
      %s59 = int_to_ptr.vmem [resolvable:$true] %s58
      %64 = dma.hbm_to_vmem [thread:$0]  %s3, 4096, %s59, [#allocation9], 128, 128, 8
    $region17: #{tpu_custom_call.1} parent=1 // pred_fallthru
      _
    // Predicated region
    $region18: #{tpu_custom_call.1} parent=1 // pred_check
      _
    $region19: #{tpu_custom_call.1} parent=1 // pred_check_branch
      %66 = sbr.rel (0) target = $region21
    $region20: #{tpu_custom_call.1} parent=1 // pred_region
      %s68 = ssub.s32 4096, 4096
      %69 = vsyncadd [#allocation9], %s68
      %s70 = sshll.u32 [#allocation10], 4
      %s71 = int_to_ptr.vmem [resolvable:$true] %s70
      %76 = dma.hbm_to_vmem [thread:$0]  %s4, 4096, %s71, [#allocation9], 128, 128, 8
    $region21: #{tpu_custom_call.1} parent=1 // pred_fallthru
      _
    // Predicated region
    $region22: #{tpu_custom_call.1} parent=1 // pred_check
      _
    $region23: #{tpu_custom_call.1} parent=1 // pred_check_branch
      %78 = sbr.rel (0) target = $region25
    $region24: #{tpu_custom_call.1} parent=1 // pred_region
      %s80 = ssub.s32 4096, 4096
      %81 = vsyncadd [#allocation12], %s80
      %s82 = sshll.u32 [#allocation11], 4
      %s83 = int_to_ptr.vmem [resolvable:$true] %s82
      %88 = dma.hbm_to_vmem [thread:$0]  %s5, 4096, %s83, [#allocation12], 128, 128, 8
    $region25: #{tpu_custom_call.1} parent=1 // pred_fallthru
      _
    // Predicated region
    $region26: #{tpu_custom_call.1} parent=1 // pred_check
      _
    $region27: #{tpu_custom_call.1} parent=1 // pred_check_branch
      %90 = sbr.rel (0) target = $region29
    $region28: #{tpu_custom_call.1} parent=1 // pred_region
      %s92 = ssub.s32 256, 256
      %93 = vsyncadd [#allocation12], %s92
      %s95 = sshll.u32 [#allocation13], 4
      %s96 = int_to_ptr.vmem [resolvable:$true] %s95
      %98 = dma.hbm_to_vmem [thread:$0]  %s6, 256, %s96, [#allocation12]
    $region29: #{tpu_custom_call.1} parent=1 // pred_fallthru
      _
    // Predicated region
    $region30: #{tpu_custom_call.1} parent=1 // pred_check
      _
    $region31: #{tpu_custom_call.1} parent=1 // pred_check_branch
      %100 = sbr.rel (0) target = $region33
    $region32: #{tpu_custom_call.1} parent=1 // pred_region
      %101 = dma.done [#allocation3], 1024
    $region33: #{tpu_custom_call.1} parent=1 // pred_fallthru
      _
    // Predicated region
    $region34: #{tpu_custom_call.1} parent=1 // pred_check
      _
    $region35: #{tpu_custom_call.1} parent=1 // pred_check_branch
      %103 = sbr.rel (0) target = $region37
    $region36: #{tpu_custom_call.1} parent=1 // pred_region
      %104 = dma.done [#allocation6], 16384
    $region37: #{tpu_custom_call.1} parent=1 // pred_fallthru
      _
    // Predicated region
    $region38: #{tpu_custom_call.1} parent=1 // pred_check
      _
    $region39: #{tpu_custom_call.1} parent=1 // pred_check_branch
      %106 = sbr.rel (0) target = $region41
    $region40: #{tpu_custom_call.1} parent=1 // pred_region
      %107 = dma.done [#allocation6], 4096
    $region41: #{tpu_custom_call.1} parent=1 // pred_fallthru
      _
    // Predicated region
    $region42: #{tpu_custom_call.1} parent=1 // pred_check
      _
    $region43: #{tpu_custom_call.1} parent=1 // pred_check_branch
      %109 = sbr.rel (0) target = $region45
    $region44: #{tpu_custom_call.1} parent=1 // pred_region
      %110 = dma.done [#allocation9], 4096
    $region45: #{tpu_custom_call.1} parent=1 // pred_fallthru
      _
    // Predicated region
    $region46: #{tpu_custom_call.1} parent=1 // pred_check
      _
    $region47: #{tpu_custom_call.1} parent=1 // pred_check_branch
      %112 = sbr.rel (0) target = $region49
    $region48: #{tpu_custom_call.1} parent=1 // pred_region
      %113 = dma.done [#allocation9], 4096
    $region49: #{tpu_custom_call.1} parent=1 // pred_fallthru
      _
    // Predicated region
    $region50: #{tpu_custom_call.1} parent=1 // pred_check
      _
    $region51: #{tpu_custom_call.1} parent=1 // pred_check_branch
      %115 = sbr.rel (0) target = $region53
    $region52: #{tpu_custom_call.1} parent=1 // pred_region
      %116 = dma.done [#allocation12], 4096
    $region53: #{tpu_custom_call.1} parent=1 // pred_fallthru
      _
    // Predicated region
    $region54: #{tpu_custom_call.1} parent=1 // pred_check
      _
    $region55: #{tpu_custom_call.1} parent=1 // pred_check_branch
      %118 = sbr.rel (0) target = $region57
    $region56: #{tpu_custom_call.1} parent=1 // pred_region
      %119 = dma.done [#allocation12], 256
    $region57: #{tpu_custom_call.1} parent=1 // pred_fallthru
      _
    %v120 = vld [vmem:[#allocation2] sm:$0xff]
    %v121 = vld [vmem:[#allocation2 + $0x8] sm:$0xff]
    %v122 = vld [vmem:[#allocation2 + $0x10] sm:$0xff]
    %v123 = vld [vmem:[#allocation2 + $0x18] sm:$0xff]
    %v124 = vld [vmem:[#allocation2 + $0x20] sm:$0xff]
    %v125 = vld [vmem:[#allocation2 + $0x28] sm:$0xff]
    %v126 = vld [vmem:[#allocation2 + $0x30] sm:$0xff]
    %v127 = vld [vmem:[#allocation2 + $0x38] sm:$0xff]
    %v128 = vld [vmem:[#allocation13] sm:$0x1f]
    %v129 = vld [vmem:[#allocation13 + $0x8] sm:$0x1f]
    %v130 = vld [vmem:[#allocation5] sm:$0xff]
    %v131 = vld [vmem:[#allocation5 + $0x8] sm:$0xff]
    %v132 = vld [vmem:[#allocation5 + $0x10] sm:$0xff]
    %v133 = vld [vmem:[#allocation5 + $0x18] sm:$0xff]
    %v134 = vld [vmem:[#allocation5 + $0x20] sm:$0xff]
    %v135 = vld [vmem:[#allocation5 + $0x28] sm:$0xff]
    %v136 = vld [vmem:[#allocation5 + $0x30] sm:$0xff]
    %v137 = vld [vmem:[#allocation5 + $0x38] sm:$0xff]
    %v138 = vld [vmem:[#allocation5 + $0x40] sm:$0xff]
    %v139 = vld [vmem:[#allocation5 + $0x48] sm:$0xff]
    %v140 = vld [vmem:[#allocation5 + $0x50] sm:$0xff]
    %v141 = vld [vmem:[#allocation5 + $0x58] sm:$0xff]
    %v142 = vld [vmem:[#allocation5 + $0x60] sm:$0xff]
    %v143 = vld [vmem:[#allocation5 + $0x68] sm:$0xff]
    %v144 = vld [vmem:[#allocation5 + $0x70] sm:$0xff]
    %v145 = vld [vmem:[#allocation5 + $0x78] sm:$0xff]
    %v146 = vld [vmem:[#allocation5 + $0x80] sm:$0xff]
    %v147 = vld [vmem:[#allocation5 + $0x88] sm:$0xff]
    %v148 = vld [vmem:[#allocation5 + $0x90] sm:$0xff]
    %v149 = vld [vmem:[#allocation5 + $0x98] sm:$0xff]
    %v150 = vld [vmem:[#allocation5 + $0xa0] sm:$0xff]
    %v151 = vld [vmem:[#allocation5 + $0xa8] sm:$0xff]
    %v152 = vld [vmem:[#allocation5 + $0xb0] sm:$0xff]
    %v153 = vld [vmem:[#allocation5 + $0xb8] sm:$0xff]
    %v154 = vld [vmem:[#allocation5 + $0xc0] sm:$0xff]
    %v155 = vld [vmem:[#allocation5 + $0xc8] sm:$0xff]
    %v156 = vld [vmem:[#allocation5 + $0xd0] sm:$0xff]
    %v157 = vld [vmem:[#allocation5 + $0xd8] sm:$0xff]
    %v158 = vld [vmem:[#allocation5 + $0xe0] sm:$0xff]
    %v159 = vld [vmem:[#allocation5 + $0xe8] sm:$0xff]
    %v160 = vld [vmem:[#allocation5 + $0xf0] sm:$0xff]
    %v161 = vld [vmem:[#allocation5 + $0xf8] sm:$0xff]
    %v162 = vld [vmem:[#allocation5 + $0x100] sm:$0xff]
    %v163 = vld [vmem:[#allocation5 + $0x108] sm:$0xff]
    %v164 = vld [vmem:[#allocation5 + $0x110] sm:$0xff]
    %v165 = vld [vmem:[#allocation5 + $0x118] sm:$0xff]
    %v166 = vld [vmem:[#allocation5 + $0x120] sm:$0xff]
    %v167 = vld [vmem:[#allocation5 + $0x128] sm:$0xff]
    %v168 = vld [vmem:[#allocation5 + $0x130] sm:$0xff]
    %v169 = vld [vmem:[#allocation5 + $0x138] sm:$0xff]
    %v170 = vld [vmem:[#allocation5 + $0x140] sm:$0xff]
    %v171 = vld [vmem:[#allocation5 + $0x148] sm:$0xff]
    %v172 = vld [vmem:[#allocation5 + $0x150] sm:$0xff]
    %v173 = vld [vmem:[#allocation5 + $0x158] sm:$0xff]
    %v174 = vld [vmem:[#allocation5 + $0x160] sm:$0xff]
    %v175 = vld [vmem:[#allocation5 + $0x168] sm:$0xff]
    %v176 = vld [vmem:[#allocation5 + $0x170] sm:$0xff]
    %v177 = vld [vmem:[#allocation5 + $0x178] sm:$0xff]
    %v178 = vld [vmem:[#allocation5 + $0x180] sm:$0xff]
    %v179 = vld [vmem:[#allocation5 + $0x188] sm:$0xff]
    %v180 = vld [vmem:[#allocation5 + $0x190] sm:$0xff]
    %v181 = vld [vmem:[#allocation5 + $0x198] sm:$0xff]
    %v182 = vld [vmem:[#allocation5 + $0x1a0] sm:$0xff]
    %v183 = vld [vmem:[#allocation5 + $0x1a8] sm:$0xff]
    %v184 = vld [vmem:[#allocation5 + $0x1b0] sm:$0xff]
    %v185 = vld [vmem:[#allocation5 + $0x1b8] sm:$0xff]
    %v186 = vld [vmem:[#allocation5 + $0x1c0] sm:$0xff]
    %v187 = vld [vmem:[#allocation5 + $0x1c8] sm:$0xff]
    %v188 = vld [vmem:[#allocation5 + $0x1d0] sm:$0xff]
    %v189 = vld [vmem:[#allocation5 + $0x1d8] sm:$0xff]
    %v190 = vld [vmem:[#allocation5 + $0x1e0] sm:$0xff]
    %v191 = vld [vmem:[#allocation5 + $0x1e8] sm:$0xff]
    %v192 = vld [vmem:[#allocation5 + $0x1f0] sm:$0xff]
    %v193 = vld [vmem:[#allocation5 + $0x1f8] sm:$0xff]
    %v194 = vld [vmem:[#allocation5 + $0x200] sm:$0xff]
    %v195 = vld [vmem:[#allocation5 + $0x208] sm:$0xff]
    %v196 = vld [vmem:[#allocation5 + $0x210] sm:$0xff]
    %v197 = vld [vmem:[#allocation5 + $0x218] sm:$0xff]
    %v198 = vld [vmem:[#allocation5 + $0x220] sm:$0xff]
    %v199 = vld [vmem:[#allocation5 + $0x228] sm:$0xff]
    %v200 = vld [vmem:[#allocation5 + $0x230] sm:$0xff]
    %v201 = vld [vmem:[#allocation5 + $0x238] sm:$0xff]
    %v202 = vld [vmem:[#allocation5 + $0x240] sm:$0xff]
    %v203 = vld [vmem:[#allocation5 + $0x248] sm:$0xff]
    %v204 = vld [vmem:[#allocation5 + $0x250] sm:$0xff]
    %v205 = vld [vmem:[#allocation5 + $0x258] sm:$0xff]
    %v206 = vld [vmem:[#allocation5 + $0x260] sm:$0xff]
    %v207 = vld [vmem:[#allocation5 + $0x268] sm:$0xff]
    %v208 = vld [vmem:[#allocation5 + $0x270] sm:$0xff]
    %v209 = vld [vmem:[#allocation5 + $0x278] sm:$0xff]
    %v210 = vld [vmem:[#allocation5 + $0x280] sm:$0xff]
    %v211 = vld [vmem:[#allocation5 + $0x288] sm:$0xff]
    %v212 = vld [vmem:[#allocation5 + $0x290] sm:$0xff]
    %v213 = vld [vmem:[#allocation5 + $0x298] sm:$0xff]
    %v214 = vld [vmem:[#allocation5 + $0x2a0] sm:$0xff]
    %v215 = vld [vmem:[#allocation5 + $0x2a8] sm:$0xff]
    %v216 = vld [vmem:[#allocation5 + $0x2b0] sm:$0xff]
    %v217 = vld [vmem:[#allocation5 + $0x2b8] sm:$0xff]
    %v218 = vld [vmem:[#allocation5 + $0x2c0] sm:$0xff]
    %v219 = vld [vmem:[#allocation5 + $0x2c8] sm:$0xff]
    %v220 = vld [vmem:[#allocation5 + $0x2d0] sm:$0xff]
    %v221 = vld [vmem:[#allocation5 + $0x2d8] sm:$0xff]
    %v222 = vld [vmem:[#allocation5 + $0x2e0] sm:$0xff]
    %v223 = vld [vmem:[#allocation5 + $0x2e8] sm:$0xff]
    %v224 = vld [vmem:[#allocation5 + $0x2f0] sm:$0xff]
    %v225 = vld [vmem:[#allocation5 + $0x2f8] sm:$0xff]
    %v226 = vld [vmem:[#allocation5 + $0x300] sm:$0xff]
    %v227 = vld [vmem:[#allocation5 + $0x308] sm:$0xff]
    %v228 = vld [vmem:[#allocation5 + $0x310] sm:$0xff]
    %v229 = vld [vmem:[#allocation5 + $0x318] sm:$0xff]
    %v230 = vld [vmem:[#allocation5 + $0x320] sm:$0xff]
    %v231 = vld [vmem:[#allocation5 + $0x328] sm:$0xff]
    %v232 = vld [vmem:[#allocation5 + $0x330] sm:$0xff]
    %v233 = vld [vmem:[#allocation5 + $0x338] sm:$0xff]
    %v234 = vld [vmem:[#allocation5 + $0x340] sm:$0xff]
    %v235 = vld [vmem:[#allocation5 + $0x348] sm:$0xff]
    %v236 = vld [vmem:[#allocation5 + $0x350] sm:$0xff]
    %v237 = vld [vmem:[#allocation5 + $0x358] sm:$0xff]
    %v238 = vld [vmem:[#allocation5 + $0x360] sm:$0xff]
    %v239 = vld [vmem:[#allocation5 + $0x368] sm:$0xff]
    %v240 = vld [vmem:[#allocation5 + $0x370] sm:$0xff]
    %v241 = vld [vmem:[#allocation5 + $0x378] sm:$0xff]
    %v242 = vld [vmem:[#allocation5 + $0x380] sm:$0xff]
    %v243 = vld [vmem:[#allocation5 + $0x388] sm:$0xff]
    %v244 = vld [vmem:[#allocation5 + $0x390] sm:$0xff]
    %v245 = vld [vmem:[#allocation5 + $0x398] sm:$0xff]
    %v246 = vld [vmem:[#allocation5 + $0x3a0] sm:$0xff]
    %v247 = vld [vmem:[#allocation5 + $0x3a8] sm:$0xff]
    %v248 = vld [vmem:[#allocation5 + $0x3b0] sm:$0xff]
    %v249 = vld [vmem:[#allocation5 + $0x3b8] sm:$0xff]
    %v250 = vld [vmem:[#allocation5 + $0x3c0] sm:$0xff]
    %v251 = vld [vmem:[#allocation5 + $0x3c8] sm:$0xff]
    %v252 = vld [vmem:[#allocation5 + $0x3d0] sm:$0xff]
    %v253 = vld [vmem:[#allocation5 + $0x3d8] sm:$0xff]
    %v254 = vld [vmem:[#allocation5 + $0x3e0] sm:$0xff]
    %v255 = vld [vmem:[#allocation5 + $0x3e8] sm:$0xff]
    %v256 = vld [vmem:[#allocation5 + $0x3f0] sm:$0xff]
    %v257 = vld [vmem:[#allocation5 + $0x3f8] sm:$0xff]
    %v258 = vlaneseq
    %v259 = vshrl.u32 %v258, 7
    %v260 = vsub.s32 0, %v259
    %v261 = vrot.slane %v128, %v260
    %v262 = vlaneseq
    %v263 = vshrl.u32 %v262, 7
    %v264 = vsub.s32 0, %v263
    %v265 = vrot.slane %v129, %v264
    %v274 = vunpack.c.l.b16 %v120
    %v275 = vunpack.c.h.b16 %v120
    %v276 = vunpack.c.l.b16 %v121
    %v277 = vunpack.c.h.b16 %v121
    %v278 = vunpack.c.l.b16 %v122
    %v279 = vunpack.c.h.b16 %v122
    %v280 = vunpack.c.l.b16 %v123
    %v281 = vunpack.c.h.b16 %v123
    %v282 = vunpack.c.l.b16 %v124
    %v283 = vunpack.c.h.b16 %v124
    %v284 = vunpack.c.l.b16 %v125
    %v285 = vunpack.c.h.b16 %v125
    %v286 = vunpack.c.l.b16 %v126
    %v287 = vunpack.c.h.b16 %v126
    %v288 = vunpack.c.l.b16 %v127
    %v289 = vunpack.c.h.b16 %v127
    %v290 = vpack.c.b16 %v282, %v274
    %v291 = vpack.c.b16 %v283, %v275
    %v292 = vpack.c.b16 %v284, %v276
    %v293 = vpack.c.b16 %v285, %v277
    %v294 = vpack.c.b16 %v286, %v278
    %v295 = vpack.c.b16 %v287, %v279
    %v296 = vpack.c.b16 %v288, %v280
    %v297 = vpack.c.b16 %v289, %v281
    %v434 = vunpack.c.l.b16 %v130
    %v435 = vunpack.c.h.b16 %v130
    %v436 = vunpack.c.l.b16 %v131
    %v437 = vunpack.c.h.b16 %v131
    %v438 = vunpack.c.l.b16 %v132
    %v439 = vunpack.c.h.b16 %v132
    %v440 = vunpack.c.l.b16 %v133
    %v441 = vunpack.c.h.b16 %v133
    %v442 = vunpack.c.l.b16 %v134
    %v443 = vunpack.c.h.b16 %v134
    %v444 = vunpack.c.l.b16 %v135
    %v445 = vunpack.c.h.b16 %v135
    %v446 = vunpack.c.l.b16 %v136
    %v447 = vunpack.c.h.b16 %v136
    %v448 = vunpack.c.l.b16 %v137
    %v449 = vunpack.c.h.b16 %v137
    %v450 = vunpack.c.l.b16 %v138
    %v451 = vunpack.c.h.b16 %v138
    %v452 = vunpack.c.l.b16 %v139
    %v453 = vunpack.c.h.b16 %v139
    %v454 = vunpack.c.l.b16 %v140
    %v455 = vunpack.c.h.b16 %v140
    %v456 = vunpack.c.l.b16 %v141
    %v457 = vunpack.c.h.b16 %v141
    %v458 = vunpack.c.l.b16 %v142
    %v459 = vunpack.c.h.b16 %v142
    %v460 = vunpack.c.l.b16 %v143
    %v461 = vunpack.c.h.b16 %v143
    %v462 = vunpack.c.l.b16 %v144
    %v463 = vunpack.c.h.b16 %v144
    %v464 = vunpack.c.l.b16 %v145
    %v465 = vunpack.c.h.b16 %v145
    %v466 = vunpack.c.l.b16 %v146
    %v467 = vunpack.c.h.b16 %v146
    %v468 = vunpack.c.l.b16 %v147
    %v469 = vunpack.c.h.b16 %v147
    %v470 = vunpack.c.l.b16 %v148
    %v471 = vunpack.c.h.b16 %v148
    %v472 = vunpack.c.l.b16 %v149
    %v473 = vunpack.c.h.b16 %v149
    %v474 = vunpack.c.l.b16 %v150
    %v475 = vunpack.c.h.b16 %v150
    %v476 = vunpack.c.l.b16 %v151
    %v477 = vunpack.c.h.b16 %v151
    %v478 = vunpack.c.l.b16 %v152
    %v479 = vunpack.c.h.b16 %v152
    %v480 = vunpack.c.l.b16 %v153
    %v481 = vunpack.c.h.b16 %v153
    %v482 = vunpack.c.l.b16 %v154
    %v483 = vunpack.c.h.b16 %v154
    %v484 = vunpack.c.l.b16 %v155
    %v485 = vunpack.c.h.b16 %v155
    %v486 = vunpack.c.l.b16 %v156
    %v487 = vunpack.c.h.b16 %v156
    %v488 = vunpack.c.l.b16 %v157
    %v489 = vunpack.c.h.b16 %v157
    %v490 = vunpack.c.l.b16 %v158
    %v491 = vunpack.c.h.b16 %v158
    %v492 = vunpack.c.l.b16 %v159
    %v493 = vunpack.c.h.b16 %v159
    %v494 = vunpack.c.l.b16 %v160
    %v495 = vunpack.c.h.b16 %v160
    %v496 = vunpack.c.l.b16 %v161
    %v497 = vunpack.c.h.b16 %v161
    %v498 = vunpack.c.l.b16 %v162
    %v499 = vunpack.c.h.b16 %v162
    %v500 = vunpack.c.l.b16 %v163
    %v501 = vunpack.c.h.b16 %v163
    %v502 = vunpack.c.l.b16 %v164
    %v503 = vunpack.c.h.b16 %v164
    %v504 = vunpack.c.l.b16 %v165
    %v505 = vunpack.c.h.b16 %v165
    %v506 = vunpack.c.l.b16 %v166
    %v507 = vunpack.c.h.b16 %v166
    %v508 = vunpack.c.l.b16 %v167
    %v509 = vunpack.c.h.b16 %v167
    %v510 = vunpack.c.l.b16 %v168
    %v511 = vunpack.c.h.b16 %v168
    %v512 = vunpack.c.l.b16 %v169
    %v513 = vunpack.c.h.b16 %v169
    %v514 = vunpack.c.l.b16 %v170
    %v515 = vunpack.c.h.b16 %v170
    %v516 = vunpack.c.l.b16 %v171
    %v517 = vunpack.c.h.b16 %v171
    %v518 = vunpack.c.l.b16 %v172
    %v519 = vunpack.c.h.b16 %v172
    %v520 = vunpack.c.l.b16 %v173
    %v521 = vunpack.c.h.b16 %v173
    %v522 = vunpack.c.l.b16 %v174
    %v523 = vunpack.c.h.b16 %v174
    %v524 = vunpack.c.l.b16 %v175
    %v525 = vunpack.c.h.b16 %v175
    %v526 = vunpack.c.l.b16 %v176
    %v527 = vunpack.c.h.b16 %v176
    %v528 = vunpack.c.l.b16 %v177
    %v529 = vunpack.c.h.b16 %v177
    %v530 = vunpack.c.l.b16 %v178
    %v531 = vunpack.c.h.b16 %v178
    %v532 = vunpack.c.l.b16 %v179
    %v533 = vunpack.c.h.b16 %v179
    %v534 = vunpack.c.l.b16 %v180
    %v535 = vunpack.c.h.b16 %v180
    %v536 = vunpack.c.l.b16 %v181
    %v537 = vunpack.c.h.b16 %v181
    %v538 = vunpack.c.l.b16 %v182
    %v539 = vunpack.c.h.b16 %v182
    %v540 = vunpack.c.l.b16 %v183
    %v541 = vunpack.c.h.b16 %v183
    %v542 = vunpack.c.l.b16 %v184
    %v543 = vunpack.c.h.b16 %v184
    %v544 = vunpack.c.l.b16 %v185
    %v545 = vunpack.c.h.b16 %v185
    %v546 = vunpack.c.l.b16 %v186
    %v547 = vunpack.c.h.b16 %v186
    %v548 = vunpack.c.l.b16 %v187
    %v549 = vunpack.c.h.b16 %v187
    %v550 = vunpack.c.l.b16 %v188
    %v551 = vunpack.c.h.b16 %v188
    %v552 = vunpack.c.l.b16 %v189
    %v553 = vunpack.c.h.b16 %v189
    %v554 = vunpack.c.l.b16 %v190
    %v555 = vunpack.c.h.b16 %v190
    %v556 = vunpack.c.l.b16 %v191
    %v557 = vunpack.c.h.b16 %v191
    %v558 = vunpack.c.l.b16 %v192
    %v559 = vunpack.c.h.b16 %v192
    %v560 = vunpack.c.l.b16 %v193
    %v561 = vunpack.c.h.b16 %v193
    %v562 = vunpack.c.l.b16 %v194
    %v563 = vunpack.c.h.b16 %v194
    %v564 = vunpack.c.l.b16 %v195
    %v565 = vunpack.c.h.b16 %v195
    %v566 = vunpack.c.l.b16 %v196
    %v567 = vunpack.c.h.b16 %v196
    %v568 = vunpack.c.l.b16 %v197
    %v569 = vunpack.c.h.b16 %v197
    %v570 = vunpack.c.l.b16 %v198
    %v571 = vunpack.c.h.b16 %v198
    %v572 = vunpack.c.l.b16 %v199
    %v573 = vunpack.c.h.b16 %v199
    %v574 = vunpack.c.l.b16 %v200
    %v575 = vunpack.c.h.b16 %v200
    %v576 = vunpack.c.l.b16 %v201
    %v577 = vunpack.c.h.b16 %v201
    %v578 = vunpack.c.l.b16 %v202
    %v579 = vunpack.c.h.b16 %v202
    %v580 = vunpack.c.l.b16 %v203
    %v581 = vunpack.c.h.b16 %v203
    %v582 = vunpack.c.l.b16 %v204
    %v583 = vunpack.c.h.b16 %v204
    %v584 = vunpack.c.l.b16 %v205
    %v585 = vunpack.c.h.b16 %v205
    %v586 = vunpack.c.l.b16 %v206
    %v587 = vunpack.c.h.b16 %v206
    %v588 = vunpack.c.l.b16 %v207
    %v589 = vunpack.c.h.b16 %v207
    %v590 = vunpack.c.l.b16 %v208
    %v591 = vunpack.c.h.b16 %v208
    %v592 = vunpack.c.l.b16 %v209
    %v593 = vunpack.c.h.b16 %v209
    %v594 = vunpack.c.l.b16 %v210
    %v595 = vunpack.c.h.b16 %v210
    %v596 = vunpack.c.l.b16 %v211
    %v597 = vunpack.c.h.b16 %v211
    %v598 = vunpack.c.l.b16 %v212
    %v599 = vunpack.c.h.b16 %v212
    %v600 = vunpack.c.l.b16 %v213
    %v601 = vunpack.c.h.b16 %v213
    %v602 = vunpack.c.l.b16 %v214
    %v603 = vunpack.c.h.b16 %v214
    %v604 = vunpack.c.l.b16 %v215
    %v605 = vunpack.c.h.b16 %v215
    %v606 = vunpack.c.l.b16 %v216
    %v607 = vunpack.c.h.b16 %v216
    %v608 = vunpack.c.l.b16 %v217
    %v609 = vunpack.c.h.b16 %v217
    %v610 = vunpack.c.l.b16 %v218
    %v611 = vunpack.c.h.b16 %v218
    %v612 = vunpack.c.l.b16 %v219
    %v613 = vunpack.c.h.b16 %v219
    %v614 = vunpack.c.l.b16 %v220
    %v615 = vunpack.c.h.b16 %v220
    %v616 = vunpack.c.l.b16 %v221
    %v617 = vunpack.c.h.b16 %v221
    %v618 = vunpack.c.l.b16 %v222
    %v619 = vunpack.c.h.b16 %v222
    %v620 = vunpack.c.l.b16 %v223
    %v621 = vunpack.c.h.b16 %v223
    %v622 = vunpack.c.l.b16 %v224
    %v623 = vunpack.c.h.b16 %v224
    %v624 = vunpack.c.l.b16 %v225
    %v625 = vunpack.c.h.b16 %v225
    %v626 = vunpack.c.l.b16 %v226
    %v627 = vunpack.c.h.b16 %v226
    %v628 = vunpack.c.l.b16 %v227
    %v629 = vunpack.c.h.b16 %v227
    %v630 = vunpack.c.l.b16 %v228
    %v631 = vunpack.c.h.b16 %v228
    %v632 = vunpack.c.l.b16 %v229
    %v633 = vunpack.c.h.b16 %v229
    %v634 = vunpack.c.l.b16 %v230
    %v635 = vunpack.c.h.b16 %v230
    %v636 = vunpack.c.l.b16 %v231
    %v637 = vunpack.c.h.b16 %v231
    %v638 = vunpack.c.l.b16 %v232
    %v639 = vunpack.c.h.b16 %v232
    %v640 = vunpack.c.l.b16 %v233
    %v641 = vunpack.c.h.b16 %v233
    %v642 = vunpack.c.l.b16 %v234
    %v643 = vunpack.c.h.b16 %v234
    %v644 = vunpack.c.l.b16 %v235
    %v645 = vunpack.c.h.b16 %v235
    %v646 = vunpack.c.l.b16 %v236
    %v647 = vunpack.c.h.b16 %v236
    %v648 = vunpack.c.l.b16 %v237
    %v649 = vunpack.c.h.b16 %v237
    %v650 = vunpack.c.l.b16 %v238
    %v651 = vunpack.c.h.b16 %v238
    %v652 = vunpack.c.l.b16 %v239
    %v653 = vunpack.c.h.b16 %v239
    %v654 = vunpack.c.l.b16 %v240
    %v655 = vunpack.c.h.b16 %v240
    %v656 = vunpack.c.l.b16 %v241
    %v657 = vunpack.c.h.b16 %v241
    %v658 = vunpack.c.l.b16 %v242
    %v659 = vunpack.c.h.b16 %v242
    %v660 = vunpack.c.l.b16 %v243
    %v661 = vunpack.c.h.b16 %v243
    %v662 = vunpack.c.l.b16 %v244
    %v663 = vunpack.c.h.b16 %v244
    %v664 = vunpack.c.l.b16 %v245
    %v665 = vunpack.c.h.b16 %v245
    %v666 = vunpack.c.l.b16 %v246
    %v667 = vunpack.c.h.b16 %v246
    %v668 = vunpack.c.l.b16 %v247
    %v669 = vunpack.c.h.b16 %v247
    %v670 = vunpack.c.l.b16 %v248
    %v671 = vunpack.c.h.b16 %v248
    %v672 = vunpack.c.l.b16 %v249
    %v673 = vunpack.c.h.b16 %v249
    %v674 = vunpack.c.l.b16 %v250
    %v675 = vunpack.c.h.b16 %v250
    %v676 = vunpack.c.l.b16 %v251
    %v677 = vunpack.c.h.b16 %v251
    %v678 = vunpack.c.l.b16 %v252
    %v679 = vunpack.c.h.b16 %v252
    %v680 = vunpack.c.l.b16 %v253
    %v681 = vunpack.c.h.b16 %v253
    %v682 = vunpack.c.l.b16 %v254
    %v683 = vunpack.c.h.b16 %v254
    %v684 = vunpack.c.l.b16 %v255
    %v685 = vunpack.c.h.b16 %v255
    %v686 = vunpack.c.l.b16 %v256
    %v687 = vunpack.c.h.b16 %v256
    %v688 = vunpack.c.l.b16 %v257
    %v689 = vunpack.c.h.b16 %v257
    %v690 = vpack.c.b16 %v436, %v434
    %v691 = vpack.c.b16 %v437, %v435
    %v692 = vpack.c.b16 %v440, %v438
    %v693 = vpack.c.b16 %v441, %v439
    %v694 = vpack.c.b16 %v444, %v442
    %v695 = vpack.c.b16 %v445, %v443
    %v696 = vpack.c.b16 %v448, %v446
    %v697 = vpack.c.b16 %v449, %v447
    %v698 = vpack.c.b16 %v452, %v450
    %v699 = vpack.c.b16 %v453, %v451
    %v700 = vpack.c.b16 %v456, %v454
    %v701 = vpack.c.b16 %v457, %v455
    %v702 = vpack.c.b16 %v460, %v458
    %v703 = vpack.c.b16 %v461, %v459
    %v704 = vpack.c.b16 %v464, %v462
    %v705 = vpack.c.b16 %v465, %v463
    %v706 = vpack.c.b16 %v468, %v466
    %v707 = vpack.c.b16 %v469, %v467
    %v708 = vpack.c.b16 %v472, %v470
    %v709 = vpack.c.b16 %v473, %v471
    %v710 = vpack.c.b16 %v476, %v474
    %v711 = vpack.c.b16 %v477, %v475
    %v712 = vpack.c.b16 %v480, %v478
    %v713 = vpack.c.b16 %v481, %v479
    %v714 = vpack.c.b16 %v484, %v482
    %v715 = vpack.c.b16 %v485, %v483
    %v716 = vpack.c.b16 %v488, %v486
    %v717 = vpack.c.b16 %v489, %v487
    %v718 = vpack.c.b16 %v492, %v490
    %v719 = vpack.c.b16 %v493, %v491
    %v720 = vpack.c.b16 %v496, %v494
    %v721 = vpack.c.b16 %v497, %v495
    %v722 = vpack.c.b16 %v500, %v498
    %v723 = vpack.c.b16 %v501, %v499
    %v724 = vpack.c.b16 %v504, %v502
    %v725 = vpack.c.b16 %v505, %v503
    %v726 = vpack.c.b16 %v508, %v506
    %v727 = vpack.c.b16 %v509, %v507
    %v728 = vpack.c.b16 %v512, %v510
    %v729 = vpack.c.b16 %v513, %v511
    %v730 = vpack.c.b16 %v516, %v514
    %v731 = vpack.c.b16 %v517, %v515
    %v732 = vpack.c.b16 %v520, %v518
    %v733 = vpack.c.b16 %v521, %v519
    %v734 = vpack.c.b16 %v524, %v522
    %v735 = vpack.c.b16 %v525, %v523
    %v736 = vpack.c.b16 %v528, %v526
    %v737 = vpack.c.b16 %v529, %v527
    %v738 = vpack.c.b16 %v532, %v530
    %v739 = vpack.c.b16 %v533, %v531
    %v740 = vpack.c.b16 %v536, %v534
    %v741 = vpack.c.b16 %v537, %v535
    %v742 = vpack.c.b16 %v540, %v538
    %v743 = vpack.c.b16 %v541, %v539
    %v744 = vpack.c.b16 %v544, %v542
    %v745 = vpack.c.b16 %v545, %v543
    %v746 = vpack.c.b16 %v548, %v546
    %v747 = vpack.c.b16 %v549, %v547
    %v748 = vpack.c.b16 %v552, %v550
    %v749 = vpack.c.b16 %v553, %v551
    %v750 = vpack.c.b16 %v556, %v554
    %v751 = vpack.c.b16 %v557, %v555
    %v752 = vpack.c.b16 %v560, %v558
    %v753 = vpack.c.b16 %v561, %v559
    %v754 = vpack.c.b16 %v564, %v562
    %v755 = vpack.c.b16 %v565, %v563
    %v756 = vpack.c.b16 %v568, %v566
    %v757 = vpack.c.b16 %v569, %v567
    %v758 = vpack.c.b16 %v572, %v570
    %v759 = vpack.c.b16 %v573, %v571
    %v760 = vpack.c.b16 %v576, %v574
    %v761 = vpack.c.b16 %v577, %v575
    %v762 = vpack.c.b16 %v580, %v578
    %v763 = vpack.c.b16 %v581, %v579
    %v764 = vpack.c.b16 %v584, %v582
    %v765 = vpack.c.b16 %v585, %v583
    %v766 = vpack.c.b16 %v588, %v586
    %v767 = vpack.c.b16 %v589, %v587
    %v768 = vpack.c.b16 %v592, %v590
    %v769 = vpack.c.b16 %v593, %v591
    %v770 = vpack.c.b16 %v596, %v594
    %v771 = vpack.c.b16 %v597, %v595
    %v772 = vpack.c.b16 %v600, %v598
    %v773 = vpack.c.b16 %v601, %v599
    %v774 = vpack.c.b16 %v604, %v602
    %v775 = vpack.c.b16 %v605, %v603
    %v776 = vpack.c.b16 %v608, %v606
    %v777 = vpack.c.b16 %v609, %v607
    %v778 = vpack.c.b16 %v612, %v610
    %v779 = vpack.c.b16 %v613, %v611
    %v780 = vpack.c.b16 %v616, %v614
    %v781 = vpack.c.b16 %v617, %v615
    %v782 = vpack.c.b16 %v620, %v618
    %v783 = vpack.c.b16 %v621, %v619
    %v784 = vpack.c.b16 %v624, %v622
    %v785 = vpack.c.b16 %v625, %v623
    %v786 = vpack.c.b16 %v628, %v626
    %v787 = vpack.c.b16 %v629, %v627
    %v788 = vpack.c.b16 %v632, %v630
    %v789 = vpack.c.b16 %v633, %v631
    %v790 = vpack.c.b16 %v636, %v634
    %v791 = vpack.c.b16 %v637, %v635
    %v792 = vpack.c.b16 %v640, %v638
    %v793 = vpack.c.b16 %v641, %v639
    %v794 = vpack.c.b16 %v644, %v642
    %v795 = vpack.c.b16 %v645, %v643
    %v796 = vpack.c.b16 %v648, %v646
    %v797 = vpack.c.b16 %v649, %v647
    %v798 = vpack.c.b16 %v652, %v650
    %v799 = vpack.c.b16 %v653, %v651
    %v800 = vpack.c.b16 %v656, %v654
    %v801 = vpack.c.b16 %v657, %v655
    %v802 = vpack.c.b16 %v660, %v658
    %v803 = vpack.c.b16 %v661, %v659
    %v804 = vpack.c.b16 %v664, %v662
    %v805 = vpack.c.b16 %v665, %v663
    %v806 = vpack.c.b16 %v668, %v666
    %v807 = vpack.c.b16 %v669, %v667
    %v808 = vpack.c.b16 %v672, %v670
    %v809 = vpack.c.b16 %v673, %v671
    %v810 = vpack.c.b16 %v676, %v674
    %v811 = vpack.c.b16 %v677, %v675
    %v812 = vpack.c.b16 %v680, %v678
    %v813 = vpack.c.b16 %v681, %v679
    %v814 = vpack.c.b16 %v684, %v682
    %v815 = vpack.c.b16 %v685, %v683
    %v816 = vpack.c.b16 %v688, %v686
    %v817 = vpack.c.b16 %v689, %v687
    %946 = vmatprep.subr.bf16.mxu0 %v705
    %947 = vmatpush1.bf16.msra.mxu0 %v704
    %948 = vmatprep.subr.bf16.mxu0 %v703
    %949 = vmatpush1.bf16.msra.mxu0 %v702
    %950 = vmatprep.subr.bf16.mxu0 %v701
    %951 = vmatpush1.bf16.msra.mxu0 %v700
    %952 = vmatprep.subr.bf16.mxu0 %v699
    %953 = vmatpush1.bf16.msra.mxu0 %v698
    %954 = vmatprep.subr.bf16.mxu0 %v697
    %955 = vmatpush1.bf16.msra.mxu0 %v696
    %956 = vmatprep.subr.bf16.mxu0 %v695
    %957 = vmatpush1.bf16.msra.mxu0 %v694
    %958 = vmatprep.subr.bf16.mxu0 %v693
    %959 = vmatpush1.bf16.msra.mxu0 %v692
    %960 = vmatprep.subr.bf16.mxu0 %v691
    %961 = vmatpush1.bf16.msra.mxu0 %v690
    %962 = vmatprep.subr.bf16.mxu0 %v721
    %963 = vmatpush2.bf16.msra.mxu0 %v720
    %964 = vmatprep.subr.bf16.mxu0 %v719
    %965 = vmatpush2.bf16.msra.mxu0 %v718
    %966 = vmatprep.subr.bf16.mxu0 %v717
    %967 = vmatpush2.bf16.msra.mxu0 %v716
    %968 = vmatprep.subr.bf16.mxu0 %v715
    %969 = vmatpush2.bf16.msra.mxu0 %v714
    %970 = vmatprep.subr.bf16.mxu0 %v713
    %971 = vmatpush2.bf16.msra.mxu0 %v712
    %972 = vmatprep.subr.bf16.mxu0 %v711
    %973 = vmatpush2.bf16.msra.mxu0 %v710
    %974 = vmatprep.subr.bf16.mxu0 %v709
    %975 = vmatpush2.bf16.msra.mxu0 %v708
    %976 = vmatprep.subr.bf16.mxu0 %v707
    %977 = vmatpush2.bf16.msra.mxu0 %v706
    %978 = vmatprep.mubr.bf16.mxu0 %v291
    %979 = vmatmul.mubr.bf16.gmra.mxu0 %v290
    %v980 = vpop.f32.mrf.mxu0
    %v981 = vadd.f32 %v261, %v980
    %v982 = vpop.f32.mrf.mxu0
    %v983 = vadd.f32 %v265, %v982
    %v984 = vpop.f32.mrf.mxu0
    %v985 = vadd.f32 %v261, %v984
    %v986 = vpop.f32.mrf.mxu0
    %v987 = vadd.f32 %v265, %v986
    %988 = vdwg.mxu0
    %989 = vmatprep.subr.bf16.mxu0 %v737
    %990 = vmatpush1.bf16.msra.mxu0 %v736
    %991 = vmatprep.subr.bf16.mxu0 %v735
    %992 = vmatpush1.bf16.msra.mxu0 %v734
    %993 = vmatprep.subr.bf16.mxu0 %v733
    %994 = vmatpush1.bf16.msra.mxu0 %v732
    %995 = vmatprep.subr.bf16.mxu0 %v731
    %996 = vmatpush1.bf16.msra.mxu0 %v730
    %997 = vmatprep.subr.bf16.mxu0 %v729
    %998 = vmatpush1.bf16.msra.mxu0 %v728
    %999 = vmatprep.subr.bf16.mxu0 %v727
    %1000 = vmatpush1.bf16.msra.mxu0 %v726
    %1001 = vmatprep.subr.bf16.mxu0 %v725
    %1002 = vmatpush1.bf16.msra.mxu0 %v724
    %1003 = vmatprep.subr.bf16.mxu0 %v723
    %1004 = vmatpush1.bf16.msra.mxu0 %v722
    %1005 = vmatprep.subr.bf16.mxu0 %v753
    %1006 = vmatpush2.bf16.msra.mxu0 %v752
    %1007 = vmatprep.subr.bf16.mxu0 %v751
    %1008 = vmatpush2.bf16.msra.mxu0 %v750
    %1009 = vmatprep.subr.bf16.mxu0 %v749
    %1010 = vmatpush2.bf16.msra.mxu0 %v748
    %1011 = vmatprep.subr.bf16.mxu0 %v747
    %1012 = vmatpush2.bf16.msra.mxu0 %v746
    %1013 = vmatprep.subr.bf16.mxu0 %v745
    %1014 = vmatpush2.bf16.msra.mxu0 %v744
    %1015 = vmatprep.subr.bf16.mxu0 %v743
    %1016 = vmatpush2.bf16.msra.mxu0 %v742
    %1017 = vmatprep.subr.bf16.mxu0 %v741
    %1018 = vmatpush2.bf16.msra.mxu0 %v740
    %1019 = vmatprep.subr.bf16.mxu0 %v739
    %1020 = vmatpush2.bf16.msra.mxu0 %v738
    %1021 = vmatprep.mubr.bf16.mxu0 %v293
    %1022 = vmatmul.mubr.bf16.gmra.mxu0 %v292
    %v1023 = vpop.f32.mrf.mxu0
    %v1024 = vadd.f32 %v981, %v1023
    %v1025 = vpop.f32.mrf.mxu0
    %v1026 = vadd.f32 %v983, %v1025
    %v1027 = vpop.f32.mrf.mxu0
    %v1028 = vadd.f32 %v985, %v1027
    %v1029 = vpop.f32.mrf.mxu0
    %v1030 = vadd.f32 %v987, %v1029
    %1031 = vdwg.mxu0
    %1032 = vmatprep.subr.bf16.mxu0 %v769
    %1033 = vmatpush1.bf16.msra.mxu0 %v768
    %1034 = vmatprep.subr.bf16.mxu0 %v767
    %1035 = vmatpush1.bf16.msra.mxu0 %v766
    %1036 = vmatprep.subr.bf16.mxu0 %v765
    %1037 = vmatpush1.bf16.msra.mxu0 %v764
    %1038 = vmatprep.subr.bf16.mxu0 %v763
    %1039 = vmatpush1.bf16.msra.mxu0 %v762
    %1040 = vmatprep.subr.bf16.mxu0 %v761
    %1041 = vmatpush1.bf16.msra.mxu0 %v760
    %1042 = vmatprep.subr.bf16.mxu0 %v759
    %1043 = vmatpush1.bf16.msra.mxu0 %v758
    %1044 = vmatprep.subr.bf16.mxu0 %v757
    %1045 = vmatpush1.bf16.msra.mxu0 %v756
    %1046 = vmatprep.subr.bf16.mxu0 %v755
    %1047 = vmatpush1.bf16.msra.mxu0 %v754
    %1048 = vmatprep.subr.bf16.mxu0 %v785
    %1049 = vmatpush2.bf16.msra.mxu0 %v784
    %1050 = vmatprep.subr.bf16.mxu0 %v783
    %1051 = vmatpush2.bf16.msra.mxu0 %v782
    %1052 = vmatprep.subr.bf16.mxu0 %v781
    %1053 = vmatpush2.bf16.msra.mxu0 %v780
    %1054 = vmatprep.subr.bf16.mxu0 %v779
    %1055 = vmatpush2.bf16.msra.mxu0 %v778
    %1056 = vmatprep.subr.bf16.mxu0 %v777
    %1057 = vmatpush2.bf16.msra.mxu0 %v776
    %1058 = vmatprep.subr.bf16.mxu0 %v775
    %1059 = vmatpush2.bf16.msra.mxu0 %v774
    %1060 = vmatprep.subr.bf16.mxu0 %v773
    %1061 = vmatpush2.bf16.msra.mxu0 %v772
    %1062 = vmatprep.subr.bf16.mxu0 %v771
    %1063 = vmatpush2.bf16.msra.mxu0 %v770
    %1064 = vmatprep.mubr.bf16.mxu0 %v295
    %1065 = vmatmul.mubr.bf16.gmra.mxu0 %v294
    %v1066 = vpop.f32.mrf.mxu0
    %v1067 = vadd.f32 %v1024, %v1066
    %v1068 = vpop.f32.mrf.mxu0
    %v1069 = vadd.f32 %v1026, %v1068
    %v1070 = vpop.f32.mrf.mxu0
    %v1071 = vadd.f32 %v1028, %v1070
    %v1072 = vpop.f32.mrf.mxu0
    %v1073 = vadd.f32 %v1030, %v1072
    %1074 = vdwg.mxu0
    %1075 = vmatprep.subr.bf16.mxu0 %v801
    %1076 = vmatpush1.bf16.msra.mxu0 %v800
    %1077 = vmatprep.subr.bf16.mxu0 %v799
    %1078 = vmatpush1.bf16.msra.mxu0 %v798
    %1079 = vmatprep.subr.bf16.mxu0 %v797
    %1080 = vmatpush1.bf16.msra.mxu0 %v796
    %1081 = vmatprep.subr.bf16.mxu0 %v795
    %1082 = vmatpush1.bf16.msra.mxu0 %v794
    %1083 = vmatprep.subr.bf16.mxu0 %v793
    %1084 = vmatpush1.bf16.msra.mxu0 %v792
    %1085 = vmatprep.subr.bf16.mxu0 %v791
    %1086 = vmatpush1.bf16.msra.mxu0 %v790
    %1087 = vmatprep.subr.bf16.mxu0 %v789
    %1088 = vmatpush1.bf16.msra.mxu0 %v788
    %1089 = vmatprep.subr.bf16.mxu0 %v787
    %1090 = vmatpush1.bf16.msra.mxu0 %v786
    %1091 = vmatprep.subr.bf16.mxu0 %v817
    %1092 = vmatpush2.bf16.msra.mxu0 %v816
    %1093 = vmatprep.subr.bf16.mxu0 %v815
    %1094 = vmatpush2.bf16.msra.mxu0 %v814
    %1095 = vmatprep.subr.bf16.mxu0 %v813
    %1096 = vmatpush2.bf16.msra.mxu0 %v812
    %1097 = vmatprep.subr.bf16.mxu0 %v811
    %1098 = vmatpush2.bf16.msra.mxu0 %v810
    %1099 = vmatprep.subr.bf16.mxu0 %v809
    %1100 = vmatpush2.bf16.msra.mxu0 %v808
    %1101 = vmatprep.subr.bf16.mxu0 %v807
    %1102 = vmatpush2.bf16.msra.mxu0 %v806
    %1103 = vmatprep.subr.bf16.mxu0 %v805
    %1104 = vmatpush2.bf16.msra.mxu0 %v804
    %1105 = vmatprep.subr.bf16.mxu0 %v803
    %1106 = vmatpush2.bf16.msra.mxu0 %v802
    %1107 = vmatprep.mubr.bf16.mxu0 %v297
    %1108 = vmatmul.mubr.bf16.gmra.mxu0 %v296
    %v1109 = vpop.f32.mrf.mxu0
    %v1110 = vadd.f32 %v1067, %v1109
    %v1111 = vpop.f32.mrf.mxu0
    %v1112 = vadd.f32 %v1069, %v1111
    %v1113 = vpop.f32.mrf.mxu0
    %v1114 = vadd.f32 %v1071, %v1113
    %v1115 = vpop.f32.mrf.mxu0
    %v1116 = vadd.f32 %v1073, %v1115
    %1117 = vdwg.mxu0
    %v1118 = vmax.f32 %v1110, 0.0
    %v1119 = vmax.f32 %v1112, 0.0
    %v1120 = vmax.f32 %v1114, 0.0
    %v1121 = vmax.f32 %v1116, 0.0
    %v1122 = vpack.c.bf16 %v1120, %v1118
    %v1123 = vpack.c.bf16 %v1121, %v1119
    %v1124 = vld [vmem:[#allocation7] sm:$0xff]
    %v1125 = vld [vmem:[#allocation7 + $0x8] sm:$0xff]
    %v1126 = vld [vmem:[#allocation7 + $0x10] sm:$0xff]
    %v1127 = vld [vmem:[#allocation7 + $0x18] sm:$0xff]
    %v1128 = vld [vmem:[#allocation7 + $0x20] sm:$0xff]
    %v1129 = vld [vmem:[#allocation7 + $0x28] sm:$0xff]
    %v1130 = vld [vmem:[#allocation7 + $0x30] sm:$0xff]
    %v1131 = vld [vmem:[#allocation7 + $0x38] sm:$0xff]
    %v1132 = vld [vmem:[#allocation7 + $0x40] sm:$0xff]
    %v1133 = vld [vmem:[#allocation7 + $0x48] sm:$0xff]
    %v1134 = vld [vmem:[#allocation7 + $0x50] sm:$0xff]
    %v1135 = vld [vmem:[#allocation7 + $0x58] sm:$0xff]
    %v1136 = vld [vmem:[#allocation7 + $0x60] sm:$0xff]
    %v1137 = vld [vmem:[#allocation7 + $0x68] sm:$0xff]
    %v1138 = vld [vmem:[#allocation7 + $0x70] sm:$0xff]
    %v1139 = vld [vmem:[#allocation7 + $0x78] sm:$0xff]
    %v1140 = vld [vmem:[#allocation7 + $0x80] sm:$0xff]
    %v1141 = vld [vmem:[#allocation7 + $0x88] sm:$0xff]
    %v1142 = vld [vmem:[#allocation7 + $0x90] sm:$0xff]
    %v1143 = vld [vmem:[#allocation7 + $0x98] sm:$0xff]
    %v1144 = vld [vmem:[#allocation7 + $0xa0] sm:$0xff]
    %v1145 = vld [vmem:[#allocation7 + $0xa8] sm:$0xff]
    %v1146 = vld [vmem:[#allocation7 + $0xb0] sm:$0xff]
    %v1147 = vld [vmem:[#allocation7 + $0xb8] sm:$0xff]
    %v1148 = vld [vmem:[#allocation7 + $0xc0] sm:$0xff]
    %v1149 = vld [vmem:[#allocation7 + $0xc8] sm:$0xff]
    %v1150 = vld [vmem:[#allocation7 + $0xd0] sm:$0xff]
    %v1151 = vld [vmem:[#allocation7 + $0xd8] sm:$0xff]
    %v1152 = vld [vmem:[#allocation7 + $0xe0] sm:$0xff]
    %v1153 = vld [vmem:[#allocation7 + $0xe8] sm:$0xff]
    %v1154 = vld [vmem:[#allocation7 + $0xf0] sm:$0xff]
    %v1155 = vld [vmem:[#allocation7 + $0xf8] sm:$0xff]
    %v1156 = vlaneseq
    %v1157 = vshrl.u32 %v1156, 7
    %v1158 = vsub.s32 1, %v1157
    %v1159 = vrot.slane %v128, %v1158
    %v1160 = vlaneseq
    %v1161 = vshrl.u32 %v1160, 7
    %v1162 = vsub.s32 1, %v1161
    %v1163 = vrot.slane %v129, %v1162
    %v1196 = vunpack.c.l.b16 %v1124
    %v1197 = vunpack.c.h.b16 %v1124
    %v1198 = vunpack.c.l.b16 %v1125
    %v1199 = vunpack.c.h.b16 %v1125
    %v1200 = vunpack.c.l.b16 %v1126
    %v1201 = vunpack.c.h.b16 %v1126
    %v1202 = vunpack.c.l.b16 %v1127
    %v1203 = vunpack.c.h.b16 %v1127
    %v1204 = vunpack.c.l.b16 %v1128
    %v1205 = vunpack.c.h.b16 %v1128
    %v1206 = vunpack.c.l.b16 %v1129
    %v1207 = vunpack.c.h.b16 %v1129
    %v1208 = vunpack.c.l.b16 %v1130
    %v1209 = vunpack.c.h.b16 %v1130
    %v1210 = vunpack.c.l.b16 %v1131
    %v1211 = vunpack.c.h.b16 %v1131
    %v1212 = vunpack.c.l.b16 %v1132
    %v1213 = vunpack.c.h.b16 %v1132
    %v1214 = vunpack.c.l.b16 %v1133
    %v1215 = vunpack.c.h.b16 %v1133
    %v1216 = vunpack.c.l.b16 %v1134
    %v1217 = vunpack.c.h.b16 %v1134
    %v1218 = vunpack.c.l.b16 %v1135
    %v1219 = vunpack.c.h.b16 %v1135
    %v1220 = vunpack.c.l.b16 %v1136
    %v1221 = vunpack.c.h.b16 %v1136
    %v1222 = vunpack.c.l.b16 %v1137
    %v1223 = vunpack.c.h.b16 %v1137
    %v1224 = vunpack.c.l.b16 %v1138
    %v1225 = vunpack.c.h.b16 %v1138
    %v1226 = vunpack.c.l.b16 %v1139
    %v1227 = vunpack.c.h.b16 %v1139
    %v1228 = vunpack.c.l.b16 %v1140
    %v1229 = vunpack.c.h.b16 %v1140
    %v1230 = vunpack.c.l.b16 %v1141
    %v1231 = vunpack.c.h.b16 %v1141
    %v1232 = vunpack.c.l.b16 %v1142
    %v1233 = vunpack.c.h.b16 %v1142
    %v1234 = vunpack.c.l.b16 %v1143
    %v1235 = vunpack.c.h.b16 %v1143
    %v1236 = vunpack.c.l.b16 %v1144
    %v1237 = vunpack.c.h.b16 %v1144
    %v1238 = vunpack.c.l.b16 %v1145
    %v1239 = vunpack.c.h.b16 %v1145
    %v1240 = vunpack.c.l.b16 %v1146
    %v1241 = vunpack.c.h.b16 %v1146
    %v1242 = vunpack.c.l.b16 %v1147
    %v1243 = vunpack.c.h.b16 %v1147
    %v1244 = vunpack.c.l.b16 %v1148
    %v1245 = vunpack.c.h.b16 %v1148
    %v1246 = vunpack.c.l.b16 %v1149
    %v1247 = vunpack.c.h.b16 %v1149
    %v1248 = vunpack.c.l.b16 %v1150
    %v1249 = vunpack.c.h.b16 %v1150
    %v1250 = vunpack.c.l.b16 %v1151
    %v1251 = vunpack.c.h.b16 %v1151
    %v1252 = vunpack.c.l.b16 %v1152
    %v1253 = vunpack.c.h.b16 %v1152
    %v1254 = vunpack.c.l.b16 %v1153
    %v1255 = vunpack.c.h.b16 %v1153
    %v1256 = vunpack.c.l.b16 %v1154
    %v1257 = vunpack.c.h.b16 %v1154
    %v1258 = vunpack.c.l.b16 %v1155
    %v1259 = vunpack.c.h.b16 %v1155
    %v1260 = vpack.c.b16 %v1198, %v1196
    %v1261 = vpack.c.b16 %v1199, %v1197
    %v1262 = vpack.c.b16 %v1202, %v1200
    %v1263 = vpack.c.b16 %v1203, %v1201
    %v1264 = vpack.c.b16 %v1206, %v1204
    %v1265 = vpack.c.b16 %v1207, %v1205
    %v1266 = vpack.c.b16 %v1210, %v1208
    %v1267 = vpack.c.b16 %v1211, %v1209
    %v1268 = vpack.c.b16 %v1214, %v1212
    %v1269 = vpack.c.b16 %v1215, %v1213
    %v1270 = vpack.c.b16 %v1218, %v1216
    %v1271 = vpack.c.b16 %v1219, %v1217
    %v1272 = vpack.c.b16 %v1222, %v1220
    %v1273 = vpack.c.b16 %v1223, %v1221
    %v1274 = vpack.c.b16 %v1226, %v1224
    %v1275 = vpack.c.b16 %v1227, %v1225
    %v1276 = vpack.c.b16 %v1230, %v1228
    %v1277 = vpack.c.b16 %v1231, %v1229
    %v1278 = vpack.c.b16 %v1234, %v1232
    %v1279 = vpack.c.b16 %v1235, %v1233
    %v1280 = vpack.c.b16 %v1238, %v1236
    %v1281 = vpack.c.b16 %v1239, %v1237
    %v1282 = vpack.c.b16 %v1242, %v1240
    %v1283 = vpack.c.b16 %v1243, %v1241
    %v1284 = vpack.c.b16 %v1246, %v1244
    %v1285 = vpack.c.b16 %v1247, %v1245
    %v1286 = vpack.c.b16 %v1250, %v1248
    %v1287 = vpack.c.b16 %v1251, %v1249
    %v1288 = vpack.c.b16 %v1254, %v1252
    %v1289 = vpack.c.b16 %v1255, %v1253
    %v1290 = vpack.c.b16 %v1258, %v1256
    %v1291 = vpack.c.b16 %v1259, %v1257
    %1324 = vmatprep.subr.bf16.mxu0 %v1275
    %1325 = vmatpush1.bf16.msra.mxu0 %v1274
    %1326 = vmatprep.subr.bf16.mxu0 %v1273
    %1327 = vmatpush1.bf16.msra.mxu0 %v1272
    %1328 = vmatprep.subr.bf16.mxu0 %v1271
    %1329 = vmatpush1.bf16.msra.mxu0 %v1270
    %1330 = vmatprep.subr.bf16.mxu0 %v1269
    %1331 = vmatpush1.bf16.msra.mxu0 %v1268
    %1332 = vmatprep.subr.bf16.mxu0 %v1267
    %1333 = vmatpush1.bf16.msra.mxu0 %v1266
    %1334 = vmatprep.subr.bf16.mxu0 %v1265
    %1335 = vmatpush1.bf16.msra.mxu0 %v1264
    %1336 = vmatprep.subr.bf16.mxu0 %v1263
    %1337 = vmatpush1.bf16.msra.mxu0 %v1262
    %1338 = vmatprep.subr.bf16.mxu0 %v1261
    %1339 = vmatpush1.bf16.msra.mxu0 %v1260
    %1340 = vmatprep.subr.bf16.mxu0 %v1291
    %1341 = vmatpush2.bf16.msra.mxu0 %v1290
    %1342 = vmatprep.subr.bf16.mxu0 %v1289
    %1343 = vmatpush2.bf16.msra.mxu0 %v1288
    %1344 = vmatprep.subr.bf16.mxu0 %v1287
    %1345 = vmatpush2.bf16.msra.mxu0 %v1286
    %1346 = vmatprep.subr.bf16.mxu0 %v1285
    %1347 = vmatpush2.bf16.msra.mxu0 %v1284
    %1348 = vmatprep.subr.bf16.mxu0 %v1283
    %1349 = vmatpush2.bf16.msra.mxu0 %v1282
    %1350 = vmatprep.subr.bf16.mxu0 %v1281
    %1351 = vmatpush2.bf16.msra.mxu0 %v1280
    %1352 = vmatprep.subr.bf16.mxu0 %v1279
    %1353 = vmatpush2.bf16.msra.mxu0 %v1278
    %1354 = vmatprep.subr.bf16.mxu0 %v1277
    %1355 = vmatpush2.bf16.msra.mxu0 %v1276
    %1356 = vmatprep.mubr.bf16.mxu0 %v1123
    %1357 = vmatmul.mubr.bf16.gmra.mxu0 %v1122
    %v1358 = vpop.f32.mrf.mxu0
    %v1359 = vadd.f32 %v1159, %v1358
    %v1360 = vpop.f32.mrf.mxu0
    %v1361 = vadd.f32 %v1163, %v1360
    %v1362 = vpop.f32.mrf.mxu0
    %v1363 = vadd.f32 %v1159, %v1362
    %v1364 = vpop.f32.mrf.mxu0
    %v1365 = vadd.f32 %v1163, %v1364
    %1366 = vdwg.mxu0
    %v1367 = vmax.f32 %v1359, 0.0
    %v1368 = vmax.f32 %v1361, 0.0
    %v1369 = vmax.f32 %v1363, 0.0
    %v1370 = vmax.f32 %v1365, 0.0
    %v1371 = vpack.c.bf16 %v1369, %v1367
    %v1372 = vpack.c.bf16 %v1370, %v1368
    %v1373 = vld [vmem:[#allocation8] sm:$0xff]
    %v1374 = vld [vmem:[#allocation8 + $0x8] sm:$0xff]
    %v1375 = vld [vmem:[#allocation8 + $0x10] sm:$0xff]
    %v1376 = vld [vmem:[#allocation8 + $0x18] sm:$0xff]
    %v1377 = vld [vmem:[#allocation8 + $0x20] sm:$0xff]
    %v1378 = vld [vmem:[#allocation8 + $0x28] sm:$0xff]
    %v1379 = vld [vmem:[#allocation8 + $0x30] sm:$0xff]
    %v1380 = vld [vmem:[#allocation8 + $0x38] sm:$0xff]
    %v1381 = vld [vmem:[#allocation8 + $0x40] sm:$0xff]
    %v1382 = vld [vmem:[#allocation8 + $0x48] sm:$0xff]
    %v1383 = vld [vmem:[#allocation8 + $0x50] sm:$0xff]
    %v1384 = vld [vmem:[#allocation8 + $0x58] sm:$0xff]
    %v1385 = vld [vmem:[#allocation8 + $0x60] sm:$0xff]
    %v1386 = vld [vmem:[#allocation8 + $0x68] sm:$0xff]
    %v1387 = vld [vmem:[#allocation8 + $0x70] sm:$0xff]
    %v1388 = vld [vmem:[#allocation8 + $0x78] sm:$0xff]
    %v1389 = vld [vmem:[#allocation8 + $0x80] sm:$0xff]
    %v1390 = vld [vmem:[#allocation8 + $0x88] sm:$0xff]
    %v1391 = vld [vmem:[#allocation8 + $0x90] sm:$0xff]
    %v1392 = vld [vmem:[#allocation8 + $0x98] sm:$0xff]
    %v1393 = vld [vmem:[#allocation8 + $0xa0] sm:$0xff]
    %v1394 = vld [vmem:[#allocation8 + $0xa8] sm:$0xff]
    %v1395 = vld [vmem:[#allocation8 + $0xb0] sm:$0xff]
    %v1396 = vld [vmem:[#allocation8 + $0xb8] sm:$0xff]
    %v1397 = vld [vmem:[#allocation8 + $0xc0] sm:$0xff]
    %v1398 = vld [vmem:[#allocation8 + $0xc8] sm:$0xff]
    %v1399 = vld [vmem:[#allocation8 + $0xd0] sm:$0xff]
    %v1400 = vld [vmem:[#allocation8 + $0xd8] sm:$0xff]
    %v1401 = vld [vmem:[#allocation8 + $0xe0] sm:$0xff]
    %v1402 = vld [vmem:[#allocation8 + $0xe8] sm:$0xff]
    %v1403 = vld [vmem:[#allocation8 + $0xf0] sm:$0xff]
    %v1404 = vld [vmem:[#allocation8 + $0xf8] sm:$0xff]
    %v1405 = vlaneseq
    %v1406 = vshrl.u32 %v1405, 7
    %v1407 = vsub.s32 2, %v1406
    %v1408 = vrot.slane %v128, %v1407
    %v1409 = vlaneseq
    %v1410 = vshrl.u32 %v1409, 7
    %v1411 = vsub.s32 2, %v1410
    %v1412 = vrot.slane %v129, %v1411
    %v1445 = vunpack.c.l.b16 %v1373
    %v1446 = vunpack.c.h.b16 %v1373
    %v1447 = vunpack.c.l.b16 %v1374
    %v1448 = vunpack.c.h.b16 %v1374
    %v1449 = vunpack.c.l.b16 %v1375
    %v1450 = vunpack.c.h.b16 %v1375
    %v1451 = vunpack.c.l.b16 %v1376
    %v1452 = vunpack.c.h.b16 %v1376
    %v1453 = vunpack.c.l.b16 %v1377
    %v1454 = vunpack.c.h.b16 %v1377
    %v1455 = vunpack.c.l.b16 %v1378
    %v1456 = vunpack.c.h.b16 %v1378
    %v1457 = vunpack.c.l.b16 %v1379
    %v1458 = vunpack.c.h.b16 %v1379
    %v1459 = vunpack.c.l.b16 %v1380
    %v1460 = vunpack.c.h.b16 %v1380
    %v1461 = vunpack.c.l.b16 %v1381
    %v1462 = vunpack.c.h.b16 %v1381
    %v1463 = vunpack.c.l.b16 %v1382
    %v1464 = vunpack.c.h.b16 %v1382
    %v1465 = vunpack.c.l.b16 %v1383
    %v1466 = vunpack.c.h.b16 %v1383
    %v1467 = vunpack.c.l.b16 %v1384
    %v1468 = vunpack.c.h.b16 %v1384
    %v1469 = vunpack.c.l.b16 %v1385
    %v1470 = vunpack.c.h.b16 %v1385
    %v1471 = vunpack.c.l.b16 %v1386
    %v1472 = vunpack.c.h.b16 %v1386
    %v1473 = vunpack.c.l.b16 %v1387
    %v1474 = vunpack.c.h.b16 %v1387
    %v1475 = vunpack.c.l.b16 %v1388
    %v1476 = vunpack.c.h.b16 %v1388
    %v1477 = vunpack.c.l.b16 %v1389
    %v1478 = vunpack.c.h.b16 %v1389
    %v1479 = vunpack.c.l.b16 %v1390
    %v1480 = vunpack.c.h.b16 %v1390
    %v1481 = vunpack.c.l.b16 %v1391
    %v1482 = vunpack.c.h.b16 %v1391
    %v1483 = vunpack.c.l.b16 %v1392
    %v1484 = vunpack.c.h.b16 %v1392
    %v1485 = vunpack.c.l.b16 %v1393
    %v1486 = vunpack.c.h.b16 %v1393
    %v1487 = vunpack.c.l.b16 %v1394
    %v1488 = vunpack.c.h.b16 %v1394
    %v1489 = vunpack.c.l.b16 %v1395
    %v1490 = vunpack.c.h.b16 %v1395
    %v1491 = vunpack.c.l.b16 %v1396
    %v1492 = vunpack.c.h.b16 %v1396
    %v1493 = vunpack.c.l.b16 %v1397
    %v1494 = vunpack.c.h.b16 %v1397
    %v1495 = vunpack.c.l.b16 %v1398
    %v1496 = vunpack.c.h.b16 %v1398
    %v1497 = vunpack.c.l.b16 %v1399
    %v1498 = vunpack.c.h.b16 %v1399
    %v1499 = vunpack.c.l.b16 %v1400
    %v1500 = vunpack.c.h.b16 %v1400
    %v1501 = vunpack.c.l.b16 %v1401
    %v1502 = vunpack.c.h.b16 %v1401
    %v1503 = vunpack.c.l.b16 %v1402
    %v1504 = vunpack.c.h.b16 %v1402
    %v1505 = vunpack.c.l.b16 %v1403
    %v1506 = vunpack.c.h.b16 %v1403
    %v1507 = vunpack.c.l.b16 %v1404
    %v1508 = vunpack.c.h.b16 %v1404
    %v1509 = vpack.c.b16 %v1447, %v1445
    %v1510 = vpack.c.b16 %v1448, %v1446
    %v1511 = vpack.c.b16 %v1451, %v1449
    %v1512 = vpack.c.b16 %v1452, %v1450
    %v1513 = vpack.c.b16 %v1455, %v1453
    %v1514 = vpack.c.b16 %v1456, %v1454
    %v1515 = vpack.c.b16 %v1459, %v1457
    %v1516 = vpack.c.b16 %v1460, %v1458
    %v1517 = vpack.c.b16 %v1463, %v1461
    %v1518 = vpack.c.b16 %v1464, %v1462
    %v1519 = vpack.c.b16 %v1467, %v1465
    %v1520 = vpack.c.b16 %v1468, %v1466
    %v1521 = vpack.c.b16 %v1471, %v1469
    %v1522 = vpack.c.b16 %v1472, %v1470
    %v1523 = vpack.c.b16 %v1475, %v1473
    %v1524 = vpack.c.b16 %v1476, %v1474
    %v1525 = vpack.c.b16 %v1479, %v1477
    %v1526 = vpack.c.b16 %v1480, %v1478
    %v1527 = vpack.c.b16 %v1483, %v1481
    %v1528 = vpack.c.b16 %v1484, %v1482
    %v1529 = vpack.c.b16 %v1487, %v1485
    %v1530 = vpack.c.b16 %v1488, %v1486
    %v1531 = vpack.c.b16 %v1491, %v1489
    %v1532 = vpack.c.b16 %v1492, %v1490
    %v1533 = vpack.c.b16 %v1495, %v1493
    %v1534 = vpack.c.b16 %v1496, %v1494
    %v1535 = vpack.c.b16 %v1499, %v1497
    %v1536 = vpack.c.b16 %v1500, %v1498
    %v1537 = vpack.c.b16 %v1503, %v1501
    %v1538 = vpack.c.b16 %v1504, %v1502
    %v1539 = vpack.c.b16 %v1507, %v1505
    %v1540 = vpack.c.b16 %v1508, %v1506
    %1573 = vmatprep.subr.bf16.mxu0 %v1524
    %1574 = vmatpush1.bf16.msra.mxu0 %v1523
    %1575 = vmatprep.subr.bf16.mxu0 %v1522
    %1576 = vmatpush1.bf16.msra.mxu0 %v1521
    %1577 = vmatprep.subr.bf16.mxu0 %v1520
    %1578 = vmatpush1.bf16.msra.mxu0 %v1519
    %1579 = vmatprep.subr.bf16.mxu0 %v1518
    %1580 = vmatpush1.bf16.msra.mxu0 %v1517
    %1581 = vmatprep.subr.bf16.mxu0 %v1516
    %1582 = vmatpush1.bf16.msra.mxu0 %v1515
    %1583 = vmatprep.subr.bf16.mxu0 %v1514
    %1584 = vmatpush1.bf16.msra.mxu0 %v1513
    %1585 = vmatprep.subr.bf16.mxu0 %v1512
    %1586 = vmatpush1.bf16.msra.mxu0 %v1511
    %1587 = vmatprep.subr.bf16.mxu0 %v1510
    %1588 = vmatpush1.bf16.msra.mxu0 %v1509
    %1589 = vmatprep.subr.bf16.mxu0 %v1540
    %1590 = vmatpush2.bf16.msra.mxu0 %v1539
    %1591 = vmatprep.subr.bf16.mxu0 %v1538
    %1592 = vmatpush2.bf16.msra.mxu0 %v1537
    %1593 = vmatprep.subr.bf16.mxu0 %v1536
    %1594 = vmatpush2.bf16.msra.mxu0 %v1535
    %1595 = vmatprep.subr.bf16.mxu0 %v1534
    %1596 = vmatpush2.bf16.msra.mxu0 %v1533
    %1597 = vmatprep.subr.bf16.mxu0 %v1532
    %1598 = vmatpush2.bf16.msra.mxu0 %v1531
    %1599 = vmatprep.subr.bf16.mxu0 %v1530
    %1600 = vmatpush2.bf16.msra.mxu0 %v1529
    %1601 = vmatprep.subr.bf16.mxu0 %v1528
    %1602 = vmatpush2.bf16.msra.mxu0 %v1527
    %1603 = vmatprep.subr.bf16.mxu0 %v1526
    %1604 = vmatpush2.bf16.msra.mxu0 %v1525
    %1605 = vmatprep.mubr.bf16.mxu0 %v1372
    %1606 = vmatmul.mubr.bf16.gmra.mxu0 %v1371
    %v1607 = vpop.f32.mrf.mxu0
    %v1608 = vadd.f32 %v1408, %v1607
    %v1609 = vpop.f32.mrf.mxu0
    %v1610 = vadd.f32 %v1412, %v1609
    %v1611 = vpop.f32.mrf.mxu0
    %v1612 = vadd.f32 %v1408, %v1611
    %v1613 = vpop.f32.mrf.mxu0
    %v1614 = vadd.f32 %v1412, %v1613
    %1615 = vdwg.mxu0
    %v1616 = vmax.f32 %v1608, 0.0
    %v1617 = vmax.f32 %v1610, 0.0
    %v1618 = vmax.f32 %v1612, 0.0
    %v1619 = vmax.f32 %v1614, 0.0
    %v1620 = vpack.c.bf16 %v1618, %v1616
    %v1621 = vpack.c.bf16 %v1619, %v1617
    %v1622 = vld [vmem:[#allocation10] sm:$0xff]
    %v1623 = vld [vmem:[#allocation10 + $0x8] sm:$0xff]
    %v1624 = vld [vmem:[#allocation10 + $0x10] sm:$0xff]
    %v1625 = vld [vmem:[#allocation10 + $0x18] sm:$0xff]
    %v1626 = vld [vmem:[#allocation10 + $0x20] sm:$0xff]
    %v1627 = vld [vmem:[#allocation10 + $0x28] sm:$0xff]
    %v1628 = vld [vmem:[#allocation10 + $0x30] sm:$0xff]
    %v1629 = vld [vmem:[#allocation10 + $0x38] sm:$0xff]
    %v1630 = vld [vmem:[#allocation10 + $0x40] sm:$0xff]
    %v1631 = vld [vmem:[#allocation10 + $0x48] sm:$0xff]
    %v1632 = vld [vmem:[#allocation10 + $0x50] sm:$0xff]
    %v1633 = vld [vmem:[#allocation10 + $0x58] sm:$0xff]
    %v1634 = vld [vmem:[#allocation10 + $0x60] sm:$0xff]
    %v1635 = vld [vmem:[#allocation10 + $0x68] sm:$0xff]
    %v1636 = vld [vmem:[#allocation10 + $0x70] sm:$0xff]
    %v1637 = vld [vmem:[#allocation10 + $0x78] sm:$0xff]
    %v1638 = vld [vmem:[#allocation10 + $0x80] sm:$0xff]
    %v1639 = vld [vmem:[#allocation10 + $0x88] sm:$0xff]
    %v1640 = vld [vmem:[#allocation10 + $0x90] sm:$0xff]
    %v1641 = vld [vmem:[#allocation10 + $0x98] sm:$0xff]
    %v1642 = vld [vmem:[#allocation10 + $0xa0] sm:$0xff]
    %v1643 = vld [vmem:[#allocation10 + $0xa8] sm:$0xff]
    %v1644 = vld [vmem:[#allocation10 + $0xb0] sm:$0xff]
    %v1645 = vld [vmem:[#allocation10 + $0xb8] sm:$0xff]
    %v1646 = vld [vmem:[#allocation10 + $0xc0] sm:$0xff]
    %v1647 = vld [vmem:[#allocation10 + $0xc8] sm:$0xff]
    %v1648 = vld [vmem:[#allocation10 + $0xd0] sm:$0xff]
    %v1649 = vld [vmem:[#allocation10 + $0xd8] sm:$0xff]
    %v1650 = vld [vmem:[#allocation10 + $0xe0] sm:$0xff]
    %v1651 = vld [vmem:[#allocation10 + $0xe8] sm:$0xff]
    %v1652 = vld [vmem:[#allocation10 + $0xf0] sm:$0xff]
    %v1653 = vld [vmem:[#allocation10 + $0xf8] sm:$0xff]
    %v1654 = vlaneseq
    %v1655 = vshrl.u32 %v1654, 7
    %v1656 = vsub.s32 3, %v1655
    %v1657 = vrot.slane %v128, %v1656
    %v1658 = vlaneseq
    %v1659 = vshrl.u32 %v1658, 7
    %v1660 = vsub.s32 3, %v1659
    %v1661 = vrot.slane %v129, %v1660
    %v1694 = vunpack.c.l.b16 %v1622
    %v1695 = vunpack.c.h.b16 %v1622
    %v1696 = vunpack.c.l.b16 %v1623
    %v1697 = vunpack.c.h.b16 %v1623
    %v1698 = vunpack.c.l.b16 %v1624
    %v1699 = vunpack.c.h.b16 %v1624
    %v1700 = vunpack.c.l.b16 %v1625
    %v1701 = vunpack.c.h.b16 %v1625
    %v1702 = vunpack.c.l.b16 %v1626
    %v1703 = vunpack.c.h.b16 %v1626
    %v1704 = vunpack.c.l.b16 %v1627
    %v1705 = vunpack.c.h.b16 %v1627
    %v1706 = vunpack.c.l.b16 %v1628
    %v1707 = vunpack.c.h.b16 %v1628
    %v1708 = vunpack.c.l.b16 %v1629
    %v1709 = vunpack.c.h.b16 %v1629
    %v1710 = vunpack.c.l.b16 %v1630
    %v1711 = vunpack.c.h.b16 %v1630
    %v1712 = vunpack.c.l.b16 %v1631
    %v1713 = vunpack.c.h.b16 %v1631
    %v1714 = vunpack.c.l.b16 %v1632
    %v1715 = vunpack.c.h.b16 %v1632
    %v1716 = vunpack.c.l.b16 %v1633
    %v1717 = vunpack.c.h.b16 %v1633
    %v1718 = vunpack.c.l.b16 %v1634
    %v1719 = vunpack.c.h.b16 %v1634
    %v1720 = vunpack.c.l.b16 %v1635
    %v1721 = vunpack.c.h.b16 %v1635
    %v1722 = vunpack.c.l.b16 %v1636
    %v1723 = vunpack.c.h.b16 %v1636
    %v1724 = vunpack.c.l.b16 %v1637
    %v1725 = vunpack.c.h.b16 %v1637
    %v1726 = vunpack.c.l.b16 %v1638
    %v1727 = vunpack.c.h.b16 %v1638
    %v1728 = vunpack.c.l.b16 %v1639
    %v1729 = vunpack.c.h.b16 %v1639
    %v1730 = vunpack.c.l.b16 %v1640
    %v1731 = vunpack.c.h.b16 %v1640
    %v1732 = vunpack.c.l.b16 %v1641
    %v1733 = vunpack.c.h.b16 %v1641
    %v1734 = vunpack.c.l.b16 %v1642
    %v1735 = vunpack.c.h.b16 %v1642
    %v1736 = vunpack.c.l.b16 %v1643
    %v1737 = vunpack.c.h.b16 %v1643
    %v1738 = vunpack.c.l.b16 %v1644
    %v1739 = vunpack.c.h.b16 %v1644
    %v1740 = vunpack.c.l.b16 %v1645
    %v1741 = vunpack.c.h.b16 %v1645
    %v1742 = vunpack.c.l.b16 %v1646
    %v1743 = vunpack.c.h.b16 %v1646
    %v1744 = vunpack.c.l.b16 %v1647
    %v1745 = vunpack.c.h.b16 %v1647
    %v1746 = vunpack.c.l.b16 %v1648
    %v1747 = vunpack.c.h.b16 %v1648
    %v1748 = vunpack.c.l.b16 %v1649
    %v1749 = vunpack.c.h.b16 %v1649
    %v1750 = vunpack.c.l.b16 %v1650
    %v1751 = vunpack.c.h.b16 %v1650
    %v1752 = vunpack.c.l.b16 %v1651
    %v1753 = vunpack.c.h.b16 %v1651
    %v1754 = vunpack.c.l.b16 %v1652
    %v1755 = vunpack.c.h.b16 %v1652
    %v1756 = vunpack.c.l.b16 %v1653
    %v1757 = vunpack.c.h.b16 %v1653
    %v1758 = vpack.c.b16 %v1696, %v1694
    %v1759 = vpack.c.b16 %v1697, %v1695
    %v1760 = vpack.c.b16 %v1700, %v1698
    %v1761 = vpack.c.b16 %v1701, %v1699
    %v1762 = vpack.c.b16 %v1704, %v1702
    %v1763 = vpack.c.b16 %v1705, %v1703
    %v1764 = vpack.c.b16 %v1708, %v1706
    %v1765 = vpack.c.b16 %v1709, %v1707
    %v1766 = vpack.c.b16 %v1712, %v1710
    %v1767 = vpack.c.b16 %v1713, %v1711
    %v1768 = vpack.c.b16 %v1716, %v1714
    %v1769 = vpack.c.b16 %v1717, %v1715
    %v1770 = vpack.c.b16 %v1720, %v1718
    %v1771 = vpack.c.b16 %v1721, %v1719
    %v1772 = vpack.c.b16 %v1724, %v1722
    %v1773 = vpack.c.b16 %v1725, %v1723
    %v1774 = vpack.c.b16 %v1728, %v1726
    %v1775 = vpack.c.b16 %v1729, %v1727
    %v1776 = vpack.c.b16 %v1732, %v1730
    %v1777 = vpack.c.b16 %v1733, %v1731
    %v1778 = vpack.c.b16 %v1736, %v1734
    %v1779 = vpack.c.b16 %v1737, %v1735
    %v1780 = vpack.c.b16 %v1740, %v1738
    %v1781 = vpack.c.b16 %v1741, %v1739
    %v1782 = vpack.c.b16 %v1744, %v1742
    %v1783 = vpack.c.b16 %v1745, %v1743
    %v1784 = vpack.c.b16 %v1748, %v1746
    %v1785 = vpack.c.b16 %v1749, %v1747
    %v1786 = vpack.c.b16 %v1752, %v1750
    %v1787 = vpack.c.b16 %v1753, %v1751
    %v1788 = vpack.c.b16 %v1756, %v1754
    %v1789 = vpack.c.b16 %v1757, %v1755
    %1822 = vmatprep.subr.bf16.mxu0 %v1773
    %1823 = vmatpush1.bf16.msra.mxu0 %v1772
    %1824 = vmatprep.subr.bf16.mxu0 %v1771
    %1825 = vmatpush1.bf16.msra.mxu0 %v1770
    %1826 = vmatprep.subr.bf16.mxu0 %v1769
    %1827 = vmatpush1.bf16.msra.mxu0 %v1768
    %1828 = vmatprep.subr.bf16.mxu0 %v1767
    %1829 = vmatpush1.bf16.msra.mxu0 %v1766
    %1830 = vmatprep.subr.bf16.mxu0 %v1765
    %1831 = vmatpush1.bf16.msra.mxu0 %v1764
    %1832 = vmatprep.subr.bf16.mxu0 %v1763
    %1833 = vmatpush1.bf16.msra.mxu0 %v1762
    %1834 = vmatprep.subr.bf16.mxu0 %v1761
    %1835 = vmatpush1.bf16.msra.mxu0 %v1760
    %1836 = vmatprep.subr.bf16.mxu0 %v1759
    %1837 = vmatpush1.bf16.msra.mxu0 %v1758
    %1838 = vmatprep.subr.bf16.mxu0 %v1789
    %1839 = vmatpush2.bf16.msra.mxu0 %v1788
    %1840 = vmatprep.subr.bf16.mxu0 %v1787
    %1841 = vmatpush2.bf16.msra.mxu0 %v1786
    %1842 = vmatprep.subr.bf16.mxu0 %v1785
    %1843 = vmatpush2.bf16.msra.mxu0 %v1784
    %1844 = vmatprep.subr.bf16.mxu0 %v1783
    %1845 = vmatpush2.bf16.msra.mxu0 %v1782
    %1846 = vmatprep.subr.bf16.mxu0 %v1781
    %1847 = vmatpush2.bf16.msra.mxu0 %v1780
    %1848 = vmatprep.subr.bf16.mxu0 %v1779
    %1849 = vmatpush2.bf16.msra.mxu0 %v1778
    %1850 = vmatprep.subr.bf16.mxu0 %v1777
    %1851 = vmatpush2.bf16.msra.mxu0 %v1776
    %1852 = vmatprep.subr.bf16.mxu0 %v1775
    %1853 = vmatpush2.bf16.msra.mxu0 %v1774
    %1854 = vmatprep.mubr.bf16.mxu0 %v1621
    %1855 = vmatmul.mubr.bf16.gmra.mxu0 %v1620
    %v1856 = vpop.f32.mrf.mxu0
    %v1857 = vadd.f32 %v1657, %v1856
    %v1858 = vpop.f32.mrf.mxu0
    %v1859 = vadd.f32 %v1661, %v1858
    %v1860 = vpop.f32.mrf.mxu0
    %v1861 = vadd.f32 %v1657, %v1860
    %v1862 = vpop.f32.mrf.mxu0
    %v1863 = vadd.f32 %v1661, %v1862
    %1864 = vdwg.mxu0
    %v1865 = vmax.f32 %v1857, 0.0
    %v1866 = vmax.f32 %v1859, 0.0
    %v1867 = vmax.f32 %v1861, 0.0
    %v1868 = vmax.f32 %v1863, 0.0
    %v1869 = vpack.c.bf16 %v1867, %v1865
    %v1870 = vpack.c.bf16 %v1868, %v1866
    %v1871 = vld [vmem:[#allocation11] sm:$0xff]
    %v1872 = vld [vmem:[#allocation11 + $0x8] sm:$0xff]
    %v1873 = vld [vmem:[#allocation11 + $0x10] sm:$0xff]
    %v1874 = vld [vmem:[#allocation11 + $0x18] sm:$0xff]
    %v1875 = vld [vmem:[#allocation11 + $0x20] sm:$0xff]
    %v1876 = vld [vmem:[#allocation11 + $0x28] sm:$0xff]
    %v1877 = vld [vmem:[#allocation11 + $0x30] sm:$0xff]
    %v1878 = vld [vmem:[#allocation11 + $0x38] sm:$0xff]
    %v1879 = vld [vmem:[#allocation11 + $0x40] sm:$0xff]
    %v1880 = vld [vmem:[#allocation11 + $0x48] sm:$0xff]
    %v1881 = vld [vmem:[#allocation11 + $0x50] sm:$0xff]
    %v1882 = vld [vmem:[#allocation11 + $0x58] sm:$0xff]
    %v1883 = vld [vmem:[#allocation11 + $0x60] sm:$0xff]
    %v1884 = vld [vmem:[#allocation11 + $0x68] sm:$0xff]
    %v1885 = vld [vmem:[#allocation11 + $0x70] sm:$0xff]
    %v1886 = vld [vmem:[#allocation11 + $0x78] sm:$0xff]
    %v1887 = vld [vmem:[#allocation11 + $0x80] sm:$0xff]
    %v1888 = vld [vmem:[#allocation11 + $0x88] sm:$0xff]
    %v1889 = vld [vmem:[#allocation11 + $0x90] sm:$0xff]
    %v1890 = vld [vmem:[#allocation11 + $0x98] sm:$0xff]
    %v1891 = vld [vmem:[#allocation11 + $0xa0] sm:$0xff]
    %v1892 = vld [vmem:[#allocation11 + $0xa8] sm:$0xff]
    %v1893 = vld [vmem:[#allocation11 + $0xb0] sm:$0xff]
    %v1894 = vld [vmem:[#allocation11 + $0xb8] sm:$0xff]
    %v1895 = vld [vmem:[#allocation11 + $0xc0] sm:$0xff]
    %v1896 = vld [vmem:[#allocation11 + $0xc8] sm:$0xff]
    %v1897 = vld [vmem:[#allocation11 + $0xd0] sm:$0xff]
    %v1898 = vld [vmem:[#allocation11 + $0xd8] sm:$0xff]
    %v1899 = vld [vmem:[#allocation11 + $0xe0] sm:$0xff]
    %v1900 = vld [vmem:[#allocation11 + $0xe8] sm:$0xff]
    %v1901 = vld [vmem:[#allocation11 + $0xf0] sm:$0xff]
    %v1902 = vld [vmem:[#allocation11 + $0xf8] sm:$0xff]
    %v1903 = vlaneseq
    %v1904 = vshrl.u32 %v1903, 7
    %v1905 = vsub.s32 4, %v1904
    %v1906 = vrot.slane %v128, %v1905
    %v1907 = vlaneseq
    %v1908 = vshrl.u32 %v1907, 7
    %v1909 = vsub.s32 4, %v1908
    %v1910 = vrot.slane %v129, %v1909
    %v1943 = vunpack.c.l.b16 %v1871
    %v1944 = vunpack.c.h.b16 %v1871
    %v1945 = vunpack.c.l.b16 %v1872
    %v1946 = vunpack.c.h.b16 %v1872
    %v1947 = vunpack.c.l.b16 %v1873
    %v1948 = vunpack.c.h.b16 %v1873
    %v1949 = vunpack.c.l.b16 %v1874
    %v1950 = vunpack.c.h.b16 %v1874
    %v1951 = vunpack.c.l.b16 %v1875
    %v1952 = vunpack.c.h.b16 %v1875
    %v1953 = vunpack.c.l.b16 %v1876
    %v1954 = vunpack.c.h.b16 %v1876
    %v1955 = vunpack.c.l.b16 %v1877
    %v1956 = vunpack.c.h.b16 %v1877
    %v1957 = vunpack.c.l.b16 %v1878
    %v1958 = vunpack.c.h.b16 %v1878
    %v1959 = vunpack.c.l.b16 %v1879
    %v1960 = vunpack.c.h.b16 %v1879
    %v1961 = vunpack.c.l.b16 %v1880
    %v1962 = vunpack.c.h.b16 %v1880
    %v1963 = vunpack.c.l.b16 %v1881
    %v1964 = vunpack.c.h.b16 %v1881
    %v1965 = vunpack.c.l.b16 %v1882
    %v1966 = vunpack.c.h.b16 %v1882
    %v1967 = vunpack.c.l.b16 %v1883
    %v1968 = vunpack.c.h.b16 %v1883
    %v1969 = vunpack.c.l.b16 %v1884
    %v1970 = vunpack.c.h.b16 %v1884
    %v1971 = vunpack.c.l.b16 %v1885
    %v1972 = vunpack.c.h.b16 %v1885
    %v1973 = vunpack.c.l.b16 %v1886
    %v1974 = vunpack.c.h.b16 %v1886
    %v1975 = vunpack.c.l.b16 %v1887
    %v1976 = vunpack.c.h.b16 %v1887
    %v1977 = vunpack.c.l.b16 %v1888
    %v1978 = vunpack.c.h.b16 %v1888
    %v1979 = vunpack.c.l.b16 %v1889
    %v1980 = vunpack.c.h.b16 %v1889
    %v1981 = vunpack.c.l.b16 %v1890
    %v1982 = vunpack.c.h.b16 %v1890
    %v1983 = vunpack.c.l.b16 %v1891
    %v1984 = vunpack.c.h.b16 %v1891
    %v1985 = vunpack.c.l.b16 %v1892
    %v1986 = vunpack.c.h.b16 %v1892
    %v1987 = vunpack.c.l.b16 %v1893
    %v1988 = vunpack.c.h.b16 %v1893
    %v1989 = vunpack.c.l.b16 %v1894
    %v1990 = vunpack.c.h.b16 %v1894
    %v1991 = vunpack.c.l.b16 %v1895
    %v1992 = vunpack.c.h.b16 %v1895
    %v1993 = vunpack.c.l.b16 %v1896
    %v1994 = vunpack.c.h.b16 %v1896
    %v1995 = vunpack.c.l.b16 %v1897
    %v1996 = vunpack.c.h.b16 %v1897
    %v1997 = vunpack.c.l.b16 %v1898
    %v1998 = vunpack.c.h.b16 %v1898
    %v1999 = vunpack.c.l.b16 %v1899
    %v2000 = vunpack.c.h.b16 %v1899
    %v2001 = vunpack.c.l.b16 %v1900
    %v2002 = vunpack.c.h.b16 %v1900
    %v2003 = vunpack.c.l.b16 %v1901
    %v2004 = vunpack.c.h.b16 %v1901
    %v2005 = vunpack.c.l.b16 %v1902
    %v2006 = vunpack.c.h.b16 %v1902
    %v2007 = vpack.c.b16 %v1945, %v1943
    %v2008 = vpack.c.b16 %v1946, %v1944
    %v2009 = vpack.c.b16 %v1949, %v1947
    %v2010 = vpack.c.b16 %v1950, %v1948
    %v2011 = vpack.c.b16 %v1953, %v1951
    %v2012 = vpack.c.b16 %v1954, %v1952
    %v2013 = vpack.c.b16 %v1957, %v1955
    %v2014 = vpack.c.b16 %v1958, %v1956
    %v2015 = vpack.c.b16 %v1961, %v1959
    %v2016 = vpack.c.b16 %v1962, %v1960
    %v2017 = vpack.c.b16 %v1965, %v1963
    %v2018 = vpack.c.b16 %v1966, %v1964
    %v2019 = vpack.c.b16 %v1969, %v1967
    %v2020 = vpack.c.b16 %v1970, %v1968
    %v2021 = vpack.c.b16 %v1973, %v1971
    %v2022 = vpack.c.b16 %v1974, %v1972
    %v2023 = vpack.c.b16 %v1977, %v1975
    %v2024 = vpack.c.b16 %v1978, %v1976
    %v2025 = vpack.c.b16 %v1981, %v1979
    %v2026 = vpack.c.b16 %v1982, %v1980
    %v2027 = vpack.c.b16 %v1985, %v1983
    %v2028 = vpack.c.b16 %v1986, %v1984
    %v2029 = vpack.c.b16 %v1989, %v1987
    %v2030 = vpack.c.b16 %v1990, %v1988
    %v2031 = vpack.c.b16 %v1993, %v1991
    %v2032 = vpack.c.b16 %v1994, %v1992
    %v2033 = vpack.c.b16 %v1997, %v1995
    %v2034 = vpack.c.b16 %v1998, %v1996
    %v2035 = vpack.c.b16 %v2001, %v1999
    %v2036 = vpack.c.b16 %v2002, %v2000
    %v2037 = vpack.c.b16 %v2005, %v2003
    %v2038 = vpack.c.b16 %v2006, %v2004
    %2071 = vmatprep.subr.bf16.mxu0 %v2022
    %2072 = vmatpush1.bf16.msra.mxu0 %v2021
    %2073 = vmatprep.subr.bf16.mxu0 %v2020
    %2074 = vmatpush1.bf16.msra.mxu0 %v2019
    %2075 = vmatprep.subr.bf16.mxu0 %v2018
    %2076 = vmatpush1.bf16.msra.mxu0 %v2017
    %2077 = vmatprep.subr.bf16.mxu0 %v2016
    %2078 = vmatpush1.bf16.msra.mxu0 %v2015
    %2079 = vmatprep.subr.bf16.mxu0 %v2014
    %2080 = vmatpush1.bf16.msra.mxu0 %v2013
    %2081 = vmatprep.subr.bf16.mxu0 %v2012
    %2082 = vmatpush1.bf16.msra.mxu0 %v2011
    %2083 = vmatprep.subr.bf16.mxu0 %v2010
    %2084 = vmatpush1.bf16.msra.mxu0 %v2009
    %2085 = vmatprep.subr.bf16.mxu0 %v2008
    %2086 = vmatpush1.bf16.msra.mxu0 %v2007
    %2087 = vmatprep.subr.bf16.mxu0 %v2038
    %2088 = vmatpush2.bf16.msra.mxu0 %v2037
    %2089 = vmatprep.subr.bf16.mxu0 %v2036
    %2090 = vmatpush2.bf16.msra.mxu0 %v2035
    %2091 = vmatprep.subr.bf16.mxu0 %v2034
    %2092 = vmatpush2.bf16.msra.mxu0 %v2033
    %2093 = vmatprep.subr.bf16.mxu0 %v2032
    %2094 = vmatpush2.bf16.msra.mxu0 %v2031
    %2095 = vmatprep.subr.bf16.mxu0 %v2030
    %2096 = vmatpush2.bf16.msra.mxu0 %v2029
    %2097 = vmatprep.subr.bf16.mxu0 %v2028
    %2098 = vmatpush2.bf16.msra.mxu0 %v2027
    %2099 = vmatprep.subr.bf16.mxu0 %v2026
    %2100 = vmatpush2.bf16.msra.mxu0 %v2025
    %2101 = vmatprep.subr.bf16.mxu0 %v2024
    %2102 = vmatpush2.bf16.msra.mxu0 %v2023
    %2103 = vmatprep.mubr.bf16.mxu0 %v1870
    %2104 = vmatmul.mubr.bf16.gmra.mxu0 %v1869
    %v2105 = vpop.f32.mrf.mxu0
    %v2106 = vadd.f32 %v1906, %v2105
    %v2107 = vpop.f32.mrf.mxu0
    %v2108 = vadd.f32 %v1910, %v2107
    %v2109 = vpop.f32.mrf.mxu0
    %v2110 = vadd.f32 %v1906, %v2109
    %v2111 = vpop.f32.mrf.mxu0
    %v2112 = vadd.f32 %v1910, %v2111
    %2113 = vdwg.mxu0
    %v2114 = vmax.f32 %v2106, 0.0
    %v2115 = vmax.f32 %v2108, 0.0
    %v2116 = vmax.f32 %v2110, 0.0
    %v2117 = vmax.f32 %v2112, 0.0
    %2118 = vst [vmem:[#allocation14] sm:$0xff] %v2114
    %2119 = vst [vmem:[#allocation14 + $0x8] sm:$0xff] %v2115
    %2120 = vst [vmem:[#allocation14 + $0x10] sm:$0xff] %v2116
    %2121 = vst [vmem:[#allocation14 + $0x18] sm:$0xff] %v2117
    // Predicated region
    $region58: #{tpu_custom_call.1} parent=1 // pred_check
      _
    $region59: #{tpu_custom_call.1} parent=1 // pred_check_branch
      %2123 = sbr.rel (0) target = $region61
    $region60: #{tpu_custom_call.1} parent=1 // pred_region
      %s2125 = ssub.s32 512, 512
      %2126 = vsyncadd [#allocation4], %s2125
      %s2127 = sshll.u32 [#allocation14], 4
      %s2128 = int_to_ptr.vmem [resolvable:$true] %s2127
      %2133 = dma.vmem_to_hbm [thread:$0]  %s2128, 512, %s7, [#allocation4], 256, 256, 16
    $region61: #{tpu_custom_call.1} parent=1 // pred_fallthru
      _
    // Predicated region
    $region62: #{tpu_custom_call.1} parent=1 // pred_check
      _
    $region63: #{tpu_custom_call.1} parent=1 // pred_check_branch
      %2135 = sbr.rel (0) target = $region65
    $region64: #{tpu_custom_call.1} parent=1 // pred_region
      %2136 = dma.done [#allocation4], 512
    $region65: #{tpu_custom_call.1} parent=1 // pred_fallthru
      _
    %2137 = vsyncpa [#allocation3], 1
    %2138 = vsyncpa [#allocation6], 1
    %2139 = vsyncpa [#allocation9], 1
    %2140 = vsyncpa [#allocation12], 1
    %2141 = vsyncpa [#allocation4], 1

</llo_original>
